<compile_context>
chip_gen: v6e
topology: v6e:2x2x1
jax: 0.10.0
libtpu: 0.0.40
codegen_flags: <defaults>
</compile_context>

<pallas_src>
import functools
import math
from types import SimpleNamespace

import numpy as np
import jax
import jax.numpy as jnp
from jax.experimental import pallas as pl
from jax.experimental.pallas import tpu as pltpu


def _round_up(x, m):
    return ((x + m - 1) // m) * m


# ----------------------------- Pallas kernel -------------------------------- #
def _retina_level_kernel(x_ref, wf_ref, bf_ref, w1_ref, b1_ref, w2_ref, b2_ref,
                         m_ref, cmask_ref, o_ref,
                         feat_ref, h_ref, slab_ref, *, Hs, Ws):
    """Fused per-level RetinaNet forward (FPN conv -> head conv1 -> head conv2).

    Layout: spatial buffers are zero-padded (pad=1) images flattened row-major
    to ((Hs+3)*(Ws+2), C).  With that layout, tap (dy, dx) of output pixel p is
    the contiguous row window starting at p + dy*Wp + dx, so each 3x3 conv is a
    single MXU dot against a (Pp, 9*C) slab built in VMEM.

    x_ref:     (1, (Hs+3)*(Ws+2), Cin) f32   padded, flattened pooled input
    wf_ref:    (9*Cin, Cf)       bf16        tap-folded FPN conv weights
    bf_ref:    (1, Cf)           f32
    w1_ref:    (9*Cf, 2*Cf)      bf16        merged reg|cls head conv1
    b1_ref:    (1, 2*Cf)         f32
    w2_ref:    (9*2*Cf, C2p)     bf16        block-diagonal merged head conv2
    b2_ref:    (1, C2p)          f32
    m_ref:     (Hs*(Ws+2), 1)    f32         valid-column mask (0 on wrap cols)
    cmask_ref: (1, C2p)          f32         1 on cls channels, 0 elsewhere
    o_ref:     (1, Hs*(Ws+2), C2p) f32       lane-dense head output
    feat_ref:  ((Hs+3)*(Ws+2), Cf)    f32 VMEM scratch (padded FPN feature)
    h_ref:     ((Hs+3)*(Ws+2), 2*Cf)  f32 VMEM scratch (padded conv1 output)
    slab_ref:  (Hs*(Ws+2), 9*max(Cin, 2*Cf)) bf16 VMEM scratch (tap slab)
    """
    Wp = Ws + 2
    Pp = Hs * Wp
    Lp = (Hs + 3) * Wp
    Cin = x_ref.shape[-1]
    Cf = wf_ref.shape[-1]
    C1 = w1_ref.shape[-1]                      # 2*Cf (merged reg|cls)
    mask = m_ref[...]                          # (Pp, 1)

    # ---------------- FPN: 3x3 conv + bias + ReLU (single MXU dot) ----------
    for k in range(9):
        dy, dx = divmod(k, 3)
        start = dy * Wp + dx
        slab_ref[:, k * Cin:(k + 1) * Cin] = (
            x_ref[0, start:start + Pp, :].astype(jnp.bfloat16))
    feat = jnp.dot(slab_ref[:, :9 * Cin], wf_ref[...],
                   preferred_element_type=jnp.float32)
    feat = jnp.maximum(feat + bf_ref[...], 0.0) * mask

    # Stage in padded-flattened layout.  Zero only the pad rows: the interior
    # wrap columns are already zeroed by the mask multiply above.
    feat_ref[0:Wp + 1, :] = jnp.zeros((Wp + 1, Cf), jnp.float32)
    feat_ref[Wp + 1 + Pp:Lp, :] = jnp.zeros((Lp - Pp - Wp - 1, Cf), jnp.float32)
    feat_ref[Wp + 1:Wp + 1 + Pp, :] = feat

    # ---------------- head conv1 (merged reg|cls) + bias + ReLU -------------
    for k in range(9):
        dy, dx = divmod(k, 3)
        start = dy * Wp + dx
        slab_ref[:, k * Cf:(k + 1) * Cf] = (
            feat_ref[start:start + Pp, :].astype(jnp.bfloat16))
    h = jnp.dot(slab_ref[:, :9 * Cf], w1_ref[...],
                preferred_element_type=jnp.float32)
    h = jnp.maximum(h + b1_ref[...], 0.0) * mask

    h_ref[0:Wp + 1, :] = jnp.zeros((Wp + 1, C1), jnp.float32)
    h_ref[Wp + 1 + Pp:Lp, :] = jnp.zeros((Lp - Pp - Wp - 1, C1), jnp.float32)
    h_ref[Wp + 1:Wp + 1 + Pp, :] = h

    # -------- head conv2 (block-diagonal merged reg|cls) + sigmoid(cls) -----
    for k in range(9):
        dy, dx = divmod(k, 3)
        start = dy * Wp + dx
        slab_ref[:, k * C1:(k + 1) * C1] = (
            h_ref[start:start + Pp, :].astype(jnp.bfloat16))
    logits = jnp.dot(slab_ref[:, :9 * C1], w2_ref[...],
                     preferred_element_type=jnp.float32) + b2_ref[...]
    # sigmoid = 1 / (1 + exp(-x)); exp and approx reciprocal both land on EUP.
    sig = pl.reciprocal(1.0 + jnp.exp(-logits), approx=True)
    o_ref[0] = jnp.where(cmask_ref[...] > 0.5, sig, logits).astype(o_ref.dtype)


# ----------------------------- anchor generator ----------------------------- #
def generate_anchors(fh, fw, stride, ratios, scales, dtype):
    ws, hs = [], []
    for r in ratios:
        for s in scales:
            size = float(stride) * float(s)
            ws.append(size * math.sqrt(1.0 / r))
            hs.append(size * math.sqrt(r))
    ws = jnp.asarray(ws, dtype)                    # (A,)
    hs = jnp.asarray(hs, dtype)
    sy = (jnp.arange(fh, dtype=dtype) + 0.5) * stride
    sx = (jnp.arange(fw, dtype=dtype) + 0.5) * stride
    cy, cx = jnp.meshgrid(sy, sx, indexing="ij")   # (fh, fw)
    cx = cx.reshape(-1, 1)
    cy = cy.reshape(-1, 1)
    x1 = cx - ws / 2.0
    y1 = cy - hs / 2.0
    x2 = cx + ws / 2.0
    y2 = cy + hs / 2.0
    anchors = jnp.stack([x1, y1, x2, y2], axis=-1)  # (fh*fw, A, 4)
    return anchors.reshape(-1, 4)


# ----------------------------- weight packing ------------------------------- #
def _pack_w(w_oihw):
    """(O, I, 3, 3) -> (9, I, O), tap-major (k = dy*3 + dx)."""
    o, i = w_oihw.shape[0], w_oihw.shape[1]
    return jnp.transpose(w_oihw, (2, 3, 1, 0)).reshape(9, i, o)


# ----------------------------- RetinanetBase -------------------------------- #
class RetinanetBasePallas:
    def __init__(self, mode, cfg, key):
        self.mode = mode
        self.cfg = cfg
        self.num_classes = cfg.NUM_CLASSES - 1
        self.num_anchors = len(cfg.ANCHOR_RATIOS) * len(cfg.ANCHOR_SCALES)
        self.feature_strides = list(cfg.FEATURE_STRIDES)
        C_in, C_feat = cfg.IN_CHANNELS, cfg.FEAT_CHANNELS
        self.c_in, self.c_feat = C_in, C_feat
        A, K = self.num_anchors, self.num_classes
        keys = jax.random.split(key, 5)
        std = 0.01  # normalInit(std=0.01) from initializeAddedModules('normal')

        # synthetic FPN: per-level avg-pool (stride) + shared 3x3 conv + ReLU
        fpn_w = 0.1 * jax.random.normal(keys[0], (C_feat, C_in, 3, 3), jnp.float32)
        fpn_b = jnp.zeros((C_feat,), jnp.float32)

        # regression head: 3x3 conv + ReLU, then 3x3 conv -> 4*A
        reg_w1 = std * jax.random.normal(keys[1], (C_feat, C_feat, 3, 3), jnp.float32)
        reg_b1 = jnp.zeros((C_feat,), jnp.float32)
        reg_w2 = std * jax.random.normal(keys[2], (4 * A, C_feat, 3, 3), jnp.float32)
        reg_b2 = jnp.zeros((4 * A,), jnp.float32)

        # classification head: 3x3 conv + ReLU, then 3x3 conv -> A*num_classes
        cls_w1 = std * jax.random.normal(keys[3], (C_feat, C_feat, 3, 3), jnp.float32)
        cls_b1 = jnp.zeros((C_feat,), jnp.float32)
        cls_w2 = std * jax.random.normal(keys[4], (A * K, C_feat, 3, 3), jnp.float32)
        prior = 0.01  # biasInitWithProb(0.01)
        cls_b2 = jnp.full((A * K,), -math.log((1.0 - prior) / prior), jnp.float32)

        # ---- hoisted, tap-folded weight packing (done once) ----
        self.c2 = 4 * A + A * K
        self.c2p = _round_up(self.c2, 128)         # lane-dense output channels
        c2p = self.c2p

        self.fpn_wk = _pack_w(fpn_w).reshape(9 * C_in, C_feat).astype(jnp.bfloat16)
        self.fpn_bk = fpn_b.reshape(1, C_feat)

        # merged head conv1: reg | cls along Cout -> (9*Cf, 2*Cf)
        self.head_w1 = jnp.concatenate(
            [_pack_w(reg_w1), _pack_w(cls_w1)], axis=-1
        ).reshape(9 * C_feat, 2 * C_feat).astype(jnp.bfloat16)
        self.head_b1 = jnp.concatenate([reg_b1, cls_b1]).reshape(1, 2 * C_feat)

        # merged head conv2: block-diagonal (reg reads h[:, :Cf], cls h[:, Cf:]),
        # output columns zero-padded up to c2p so the kernel store is lane-dense.
        w2 = jnp.zeros((9, 2 * C_feat, c2p), jnp.float32)
        w2 = w2.at[:, :C_feat, :4 * A].set(_pack_w(reg_w2))
        w2 = w2.at[:, C_feat:, 4 * A:self.c2].set(_pack_w(cls_w2))
        self.head_w2 = w2.reshape(9 * 2 * C_feat, c2p).astype(jnp.bfloat16)

        b2 = jnp.zeros((c2p,), jnp.float32)
        b2 = b2.at[:4 * A].set(reg_b2).at[4 * A:self.c2].set(cls_b2)
        self.head_b2 = b2.reshape(1, c2p)
        self.cls_ch_mask = (
            jnp.zeros((c2p,), jnp.float32).at[4 * A:self.c2].set(1.0).reshape(1, c2p))

        self._mask_cache = {}   # (Hs, Ws) -> device (Pp, 1) valid-column mask

    # --------------------------- helpers ----------------------------------- #
    def _get_mask(self, Hs, Ws):
        key = (Hs, Ws)
        if key not in self._mask_cache:
            Wp = Ws + 2
            Pp = Hs * Wp
            m = (np.arange(Pp) % Wp) < Ws
            self._mask_cache[key] = jnp.asarray(m, jnp.float32).reshape(Pp, 1)
        return self._mask_cache[key]

    def _level_call(self, xpad, Hs, Ws):
        B, Lp, Cin = xpad.shape
        Cf = self.c_feat
        c2p = self.c2p
        Wp = Ws + 2
        Pp = Hs * Wp
        slab_w = 9 * max(Cin, 2 * Cf)
        mask = self._get_mask(Hs, Ws)
        kern = functools.partial(_retina_level_kernel, Hs=Hs, Ws=Ws)

        # Size the scoped VMEM limit from the actual resident buffers
        # (double-buffered blocks + scratches), clamped to safe bounds.
        blk_bytes = (Lp * Cin * 4 + Pp * c2p * 4 + Pp * 4 +
                     9 * Cin * Cf * 2 + 9 * Cf * 2 * Cf * 2 +
                     9 * 2 * Cf * c2p * 2 + (Cf + 2 * Cf + 2 * c2p) * 4)
        scratch_bytes = Lp * Cf * 4 + Lp * 2 * Cf * 4 + Pp * slab_w * 2
        need = 2 * blk_bytes + scratch_bytes + (4 << 20)
        vmem_limit = int(min(max(need, 16 << 20), 64 << 20))

        return pl.pallas_call(
            kern,
            out_shape=jax.ShapeDtypeStruct((B, Pp, c2p), jnp.float32),
            grid=(B,),
            in_specs=[
                pl.BlockSpec((1, Lp, Cin), lambda b: (b, 0, 0)),
                pl.BlockSpec((9 * Cin, Cf), lambda b: (0, 0)),
                pl.BlockSpec((1, Cf), lambda b: (0, 0)),
                pl.BlockSpec((9 * Cf, 2 * Cf), lambda b: (0, 0)),
                pl.BlockSpec((1, 2 * Cf), lambda b: (0, 0)),
                pl.BlockSpec((9 * 2 * Cf, c2p), lambda b: (0, 0)),
                pl.BlockSpec((1, c2p), lambda b: (0, 0)),
                pl.BlockSpec((Pp, 1), lambda b: (0, 0)),
                pl.BlockSpec((1, c2p), lambda b: (0, 0)),
            ],
            out_specs=pl.BlockSpec((1, Pp, c2p), lambda b: (b, 0, 0)),
            scratch_shapes=[
                pltpu.VMEM((Lp, Cf), jnp.float32),
                pltpu.VMEM((Lp, 2 * Cf), jnp.float32),
                pltpu.VMEM((Pp, slab_w), jnp.bfloat16),
            ],
            compiler_params=pltpu.CompilerParams(
                dimension_semantics=("parallel",),
                vmem_limit_bytes=vmem_limit),
        )(xpad, self.fpn_wk, self.fpn_bk, self.head_w1, self.head_b1,
          self.head_w2, self.head_b2, mask, self.cls_ch_mask)

    # --- forward (mirrors RetinanetBase.forward) --- #
    def forward(self, x_nchw, gt_boxes=None, img_info=None, num_gt_boxes=None):
        batch_size = x_nchw.shape[0]
        x = jnp.transpose(x_nchw, (0, 2, 3, 1)).astype(jnp.float32)  # NCHW -> NHWC
        B, H, W, Cin = x.shape
        A, K = self.num_anchors, self.num_classes

        feature_shapes = []
        preds_reg_list, preds_cls_list = [], []
        prev_pool, prev_stride = x, 1
        for s in self.feature_strides:
            Hs, Ws = H // s, W // s
            Wp = Ws + 2

            # Incremental pyramid pooling: derive each level from the previous
            # (the full-resolution input is read from HBM only once).
            if s == prev_stride:
                pooled = prev_pool
            elif s % prev_stride == 0:
                r = s // prev_stride
                pooled = prev_pool.reshape(B, Hs, r, Ws, r, Cin).mean(axis=(2, 4))
            else:
                pooled = x.reshape(B, Hs, s, Ws, s, Cin).mean(axis=(2, 4))
            prev_pool, prev_stride = pooled, s

            # zero-pad + flatten for the padded-flattened conv layout
            xpad = jnp.pad(pooled, ((0, 0), (1, 2), (1, 1), (0, 0)))
            xpad = xpad.reshape(B, (Hs + 3) * Wp, Cin)

            head = self._level_call(xpad, Hs, Ws)            # (B, Hs*Wp, c2p)

            # one pass: drop wrap columns + zero-padded channels, split reg/cls
            head = head.reshape(B, Hs, Wp, self.c2p)[:, :, :Ws, :]
            reg = head[..., :4 * A].reshape(batch_size, Hs * Ws * A, 4)
            cls = head[..., 4 * A:self.c2].reshape(batch_size, Hs * Ws * A, K)

            feature_shapes.append([Hs, Ws])
            preds_reg_list.append(reg)
            preds_cls_list.append(cls)   # sigmoid already applied in-kernel

        anchors = [generate_anchors(fh, fw, stride, self.cfg.ANCHOR_RATIOS,
                                    self.cfg.ANCHOR_SCALES, x.dtype)
                   for (fh, fw), stride in zip(feature_shapes, self.feature_strides)]
        anchors = jnp.concatenate(anchors, axis=0).astype(x.dtype)

        loss_cls = jnp.zeros((1,), x.dtype)
        loss_reg = jnp.zeros((1,), x.dtype)
        # TODO(synk): TRAIN branch (build_target_layer / focal_loss /
        # betaSmoothL1Loss) is not implemented: those submodules are None /
        # undefined in the reference module.

        preds_cls = jnp.concatenate(preds_cls_list, axis=1)
        preds_reg = jnp.concatenate(preds_reg_list, axis=1)
        return anchors, preds_cls, preds_reg, loss_cls, loss_reg


# --------------------------------- main ------------------------------------- #
if __name__ == "__main__":
    cfg = SimpleNamespace(
        NUM_CLASSES=5,                              # -> num_classes = 4
        ANCHOR_RATIOS=[0.5, 1.0, 2.0],
        ANCHOR_SCALES=[1.0, 2.0 ** (1.0 / 3.0)],    # -> num_anchors = 6
        FEATURE_STRIDES=[4, 8],
        IN_CHANNELS=4,
        FEAT_CHANNELS=32,
    )
    key = jax.random.PRNGKey(0)
    k_model, k_x = jax.random.split(key)

    model = RetinanetBasePallas("TEST", cfg, k_model)
    x = jax.random.normal(k_x, (2, 4, 16, 16), jnp.float32)          # NCHW, like PyTorch
    img_info = jnp.array([[16.0, 16.0, 1.0], [16.0, 16.0, 1.0]], jnp.float32)

    outs = model.forward(x, None, img_info, None)
    outs = jax.block_until_ready(outs)
    anchors, preds_cls, preds_reg, loss_cls, loss_reg = outs

    A = model.num_anchors
    total = sum((16 // s) * (16 // s) * A for s in cfg.FEATURE_STRIDES)
    assert anchors.shape == (total, 4)
    assert preds_cls.shape == (2, total, model.num_classes)
    assert preds_reg.shape == (2, total, 4)
    assert loss_cls.shape == (1,) and loss_reg.shape == (1,)
    assert bool(jnp.all(jnp.isfinite(anchors)))
    assert bool(jnp.all(jnp.isfinite(preds_cls))) and bool(jnp.all(jnp.isfinite(preds_reg)))
    assert bool(jnp.all(preds_cls >= 0.0)) and bool(jnp.all(preds_cls <= 1.0))

    print("KERNEL_OK")
</pallas_src>

<mosaic_0001>
module attributes {stable_mosaic.version = 11 : i64} {
  func.func @_retina_level_kernel(%arg0: i32, %arg1: memref<1x42x4xf32, #tpu.memory_space<vmem>>, %arg2: memref<36x32xbf16, #tpu.memory_space<vmem>>, %arg3: memref<1x32xf32, #tpu.memory_space<vmem>>, %arg4: memref<288x64xbf16, #tpu.memory_space<vmem>>, %arg5: memref<1x64xf32, #tpu.memory_space<vmem>>, %arg6: memref<576x128xbf16, #tpu.memory_space<vmem>>, %arg7: memref<1x128xf32, #tpu.memory_space<vmem>>, %arg8: memref<24x1xf32, #tpu.memory_space<vmem>>, %arg9: memref<1x128xf32, #tpu.memory_space<vmem>>, %arg10: memref<1x24x128xf32, #tpu.memory_space<vmem>>, %arg11: memref<42x32xf32, #tpu.memory_space<vmem>>, %arg12: memref<42x64xf32, #tpu.memory_space<vmem>>, %arg13: memref<24x576xbf16, #tpu.memory_space<vmem>>) attributes {dimension_semantics = [#tpu.dimension_semantics<parallel>], iteration_bounds = array<i64: 2>, scalar_prefetch = 0 : i64, scratch_operands = 3 : i64, tpu.core_type = #tpu.core_type<tc>, window_params = [{transform_indices = @transform_0, window_bounds = array<i64: 1, 42, 4>}, {pipeline_mode = #tpu.pipeline_mode<synchronous>, transform_indices = @transform_1, window_bounds = array<i64: 36, 32>}, {pipeline_mode = #tpu.pipeline_mode<synchronous>, transform_indices = @transform_2, window_bounds = array<i64: 1, 32>}, {pipeline_mode = #tpu.pipeline_mode<synchronous>, transform_indices = @transform_3, window_bounds = array<i64: 288, 64>}, {pipeline_mode = #tpu.pipeline_mode<synchronous>, transform_indices = @transform_4, window_bounds = array<i64: 1, 64>}, {pipeline_mode = #tpu.pipeline_mode<synchronous>, transform_indices = @transform_5, window_bounds = array<i64: 576, 128>}, {pipeline_mode = #tpu.pipeline_mode<synchronous>, transform_indices = @transform_6, window_bounds = array<i64: 1, 128>}, {pipeline_mode = #tpu.pipeline_mode<synchronous>, transform_indices = @transform_7, window_bounds = array<i64: 24, 1>}, {pipeline_mode = #tpu.pipeline_mode<synchronous>, transform_indices = @transform_8, window_bounds = array<i64: 1, 128>}, {transform_indices = @transform_9, window_bounds = array<i64: 1, 24, 128>}]} {
    %c0 = arith.constant 0 : index
    %c0_0 = arith.constant 0 : index
    %0 = vector.load %arg8[%c0, %c0_0] : memref<24x1xf32, #tpu.memory_space<vmem>>, vector<24x1xf32>
    %c0_1 = arith.constant 0 : index
    %c0_2 = arith.constant 0 : index
    %c0_3 = arith.constant 0 : index
    %1 = vector.load %arg1[%c0_1, %c0_2, %c0_3] : memref<1x42x4xf32, #tpu.memory_space<vmem>>, vector<1x24x4xf32>
    %2 = vector.shape_cast %1 : vector<1x24x4xf32> to vector<24x4xf32>
    %3 = arith.truncf %2 : vector<24x4xf32> to vector<24x4xbf16>
    %c0_4 = arith.constant 0 : index
    %c0_5 = arith.constant 0 : index
    %4 = vector.load %arg13[%c0_4, %c0_5] : memref<24x576xbf16, #tpu.memory_space<vmem>>, vector<24x4xbf16>
    tpu.vector_store %arg13[%c0_4, %c0_5], %3 {strides = array<i32>} : memref<24x576xbf16, #tpu.memory_space<vmem>>, vector<24x4xbf16>,
    %c0_6 = arith.constant 0 : index
    %c1 = arith.constant 1 : index
    %c0_7 = arith.constant 0 : index
    %5 = vector.load %arg1[%c0_6, %c1, %c0_7] : memref<1x42x4xf32, #tpu.memory_space<vmem>>, vector<1x24x4xf32>
    %6 = vector.shape_cast %5 : vector<1x24x4xf32> to vector<24x4xf32>
    %7 = arith.truncf %6 : vector<24x4xf32> to vector<24x4xbf16>
    %c0_8 = arith.constant 0 : index
    %c4 = arith.constant 4 : index
    %8 = vector.load %arg13[%c0_8, %c4] : memref<24x576xbf16, #tpu.memory_space<vmem>>, vector<24x4xbf16>
    tpu.vector_store %arg13[%c0_8, %c4], %7 {strides = array<i32>} : memref<24x576xbf16, #tpu.memory_space<vmem>>, vector<24x4xbf16>,
    %c0_9 = arith.constant 0 : index
    %c2 = arith.constant 2 : index
    %c0_10 = arith.constant 0 : index
    %9 = vector.load %arg1[%c0_9, %c2, %c0_10] : memref<1x42x4xf32, #tpu.memory_space<vmem>>, vector<1x24x4xf32>
    %10 = vector.shape_cast %9 : vector<1x24x4xf32> to vector<24x4xf32>
    %11 = arith.truncf %10 : vector<24x4xf32> to vector<24x4xbf16>
    %c0_11 = arith.constant 0 : index
    %c8 = arith.constant 8 : index
    %12 = vector.load %arg13[%c0_11, %c8] : memref<24x576xbf16, #tpu.memory_space<vmem>>, vector<24x4xbf16>
    tpu.vector_store %arg13[%c0_11, %c8], %11 {strides = array<i32>} : memref<24x576xbf16, #tpu.memory_space<vmem>>, vector<24x4xbf16>,
    %c0_12 = arith.constant 0 : index
    %c6 = arith.constant 6 : index
    %c0_13 = arith.constant 0 : index
    %13 = vector.load %arg1[%c0_12, %c6, %c0_13] : memref<1x42x4xf32, #tpu.memory_space<vmem>>, vector<1x24x4xf32>
    %14 = vector.shape_cast %13 : vector<1x24x4xf32> to vector<24x4xf32>
    %15 = arith.truncf %14 : vector<24x4xf32> to vector<24x4xbf16>
    %c0_14 = arith.constant 0 : index
    %c12 = arith.constant 12 : index
    %16 = vector.load %arg13[%c0_14, %c12] : memref<24x576xbf16, #tpu.memory_space<vmem>>, vector<24x4xbf16>
    tpu.vector_store %arg13[%c0_14, %c12], %15 {strides = array<i32>} : memref<24x576xbf16, #tpu.memory_space<vmem>>, vector<24x4xbf16>,
    %c0_15 = arith.constant 0 : index
    %c7 = arith.constant 7 : index
    %c0_16 = arith.constant 0 : index
    %17 = vector.load %arg1[%c0_15, %c7, %c0_16] : memref<1x42x4xf32, #tpu.memory_space<vmem>>, vector<1x24x4xf32>
    %18 = vector.shape_cast %17 : vector<1x24x4xf32> to vector<24x4xf32>
    %19 = arith.truncf %18 : vector<24x4xf32> to vector<24x4xbf16>
    %c0_17 = arith.constant 0 : index
    %c16 = arith.constant 16 : index
    %20 = vector.load %arg13[%c0_17, %c16] : memref<24x576xbf16, #tpu.memory_space<vmem>>, vector<24x4xbf16>
    tpu.vector_store %arg13[%c0_17, %c16], %19 {strides = array<i32>} : memref<24x576xbf16, #tpu.memory_space<vmem>>, vector<24x4xbf16>,
    %c0_18 = arith.constant 0 : index
    %c8_19 = arith.constant 8 : index
    %c0_20 = arith.constant 0 : index
    %21 = vector.load %arg1[%c0_18, %c8_19, %c0_20] : memref<1x42x4xf32, #tpu.memory_space<vmem>>, vector<1x24x4xf32>
    %22 = vector.shape_cast %21 : vector<1x24x4xf32> to vector<24x4xf32>
    %23 = arith.truncf %22 : vector<24x4xf32> to vector<24x4xbf16>
    %c0_21 = arith.constant 0 : index
    %c20 = arith.constant 20 : index
    %24 = vector.load %arg13[%c0_21, %c20] : memref<24x576xbf16, #tpu.memory_space<vmem>>, vector<24x4xbf16>
    tpu.vector_store %arg13[%c0_21, %c20], %23 {strides = array<i32>} : memref<24x576xbf16, #tpu.memory_space<vmem>>, vector<24x4xbf16>,
    %c0_22 = arith.constant 0 : index
    %c12_23 = arith.constant 12 : index
    %c0_24 = arith.constant 0 : index
    %25 = vector.load %arg1[%c0_22, %c12_23, %c0_24] : memref<1x42x4xf32, #tpu.memory_space<vmem>>, vector<1x24x4xf32>
    %26 = vector.shape_cast %25 : vector<1x24x4xf32> to vector<24x4xf32>
    %27 = arith.truncf %26 : vector<24x4xf32> to vector<24x4xbf16>
    %c0_25 = arith.constant 0 : index
    %c24 = arith.constant 24 : index
    %28 = vector.load %arg13[%c0_25, %c24] : memref<24x576xbf16, #tpu.memory_space<vmem>>, vector<24x4xbf16>
    tpu.vector_store %arg13[%c0_25, %c24], %27 {strides = array<i32>} : memref<24x576xbf16, #tpu.memory_space<vmem>>, vector<24x4xbf16>,
    %c0_26 = arith.constant 0 : index
    %c13 = arith.constant 13 : index
    %c0_27 = arith.constant 0 : index
    %29 = vector.load %arg1[%c0_26, %c13, %c0_27] : memref<1x42x4xf32, #tpu.memory_space<vmem>>, vector<1x24x4xf32>
    %30 = vector.shape_cast %29 : vector<1x24x4xf32> to vector<24x4xf32>
    %31 = arith.truncf %30 : vector<24x4xf32> to vector<24x4xbf16>
    %c0_28 = arith.constant 0 : index
    %c28 = arith.constant 28 : index
    %32 = vector.load %arg13[%c0_28, %c28] : memref<24x576xbf16, #tpu.memory_space<vmem>>, vector<24x4xbf16>
    tpu.vector_store %arg13[%c0_28, %c28], %31 {strides = array<i32>} : memref<24x576xbf16, #tpu.memory_space<vmem>>, vector<24x4xbf16>,
    %c0_29 = arith.constant 0 : index
    %c14 = arith.constant 14 : index
    %c0_30 = arith.constant 0 : index
    %33 = vector.load %arg1[%c0_29, %c14, %c0_30] : memref<1x42x4xf32, #tpu.memory_space<vmem>>, vector<1x24x4xf32>
    %34 = vector.shape_cast %33 : vector<1x24x4xf32> to vector<24x4xf32>
    %35 = arith.truncf %34 : vector<24x4xf32> to vector<24x4xbf16>
    %c0_31 = arith.constant 0 : index
    %c32 = arith.constant 32 : index
    %36 = vector.load %arg13[%c0_31, %c32] : memref<24x576xbf16, #tpu.memory_space<vmem>>, vector<24x4xbf16>
    tpu.vector_store %arg13[%c0_31, %c32], %35 {strides = array<i32>} : memref<24x576xbf16, #tpu.memory_space<vmem>>, vector<24x4xbf16>,
    %c0_32 = arith.constant 0 : index
    %c0_33 = arith.constant 0 : index
    %37 = vector.load %arg13[%c0_32, %c0_33] : memref<24x576xbf16, #tpu.memory_space<vmem>>, vector<24x36xbf16>
    %c0_34 = arith.constant 0 : index
    %c0_35 = arith.constant 0 : index
    %38 = vector.load %arg2[%c0_34, %c0_35] : memref<36x32xbf16, #tpu.memory_space<vmem>>, vector<36x32xbf16>
    %cst = arith.constant dense<0.000000e+00> : vector<24x32xf32>
    %39 = tpu.matmul %37, %38, %cst {dimension_numbers = #tpu.dot_dimension_numbers<[1], [0], [0], [1], [0, 0, 1, 1], [], []>} : vector<24x36xbf16>, vector<36x32xbf16>, vector<24x32xf32> -> vector<24x32xf32>
    %c0_36 = arith.constant 0 : index
    %c0_37 = arith.constant 0 : index
    %40 = vector.load %arg3[%c0_36, %c0_37] : memref<1x32xf32, #tpu.memory_space<vmem>>, vector<1x32xf32>
    %41 = vector.broadcast %40 : vector<1x32xf32> to vector<24x32xf32>
    %42 = arith.addf %39, %41 : vector<24x32xf32>
    %cst_38 = arith.constant 0.000000e+00 : f32
    %43 = vector.broadcast %cst_38 : f32 to vector<24x32xf32>
    %44 = arith.maximumf %42, %43 : vector<24x32xf32>
    %45 = vector.broadcast %0 : vector<24x1xf32> to vector<24x32xf32>
    %46 = arith.mulf %44, %45 : vector<24x32xf32>
    %cst_39 = arith.constant 0.000000e+00 : f32
    %47 = vector.broadcast %cst_39 : f32 to vector<7x32xf32>
    %c0_40 = arith.constant 0 : index
    %c0_41 = arith.constant 0 : index
    %48 = vector.load %arg11[%c0_40, %c0_41] : memref<42x32xf32, #tpu.memory_space<vmem>>, vector<7x32xf32>
    tpu.vector_store %arg11[%c0_40, %c0_41], %47 {strides = array<i32>} : memref<42x32xf32, #tpu.memory_space<vmem>>, vector<7x32xf32>,
    %cst_42 = arith.constant 0.000000e+00 : f32
    %49 = vector.broadcast %cst_42 : f32 to vector<11x32xf32>
    %c31 = arith.constant 31 : index
    %c0_43 = arith.constant 0 : index
    %50 = vector.load %arg11[%c31, %c0_43] : memref<42x32xf32, #tpu.memory_space<vmem>>, vector<11x32xf32>
    tpu.vector_store %arg11[%c31, %c0_43], %49 {strides = array<i32>} : memref<42x32xf32, #tpu.memory_space<vmem>>, vector<11x32xf32>,
    %c7_44 = arith.constant 7 : index
    %c0_45 = arith.constant 0 : index
    %51 = vector.load %arg11[%c7_44, %c0_45] : memref<42x32xf32, #tpu.memory_space<vmem>>, vector<24x32xf32>
    tpu.vector_store %arg11[%c7_44, %c0_45], %46 {strides = array<i32>} : memref<42x32xf32, #tpu.memory_space<vmem>>, vector<24x32xf32>,
    %c0_46 = arith.constant 0 : index
    %c0_47 = arith.constant 0 : index
    %52 = vector.load %arg11[%c0_46, %c0_47] : memref<42x32xf32, #tpu.memory_space<vmem>>, vector<24x32xf32>
    %53 = arith.truncf %52 : vector<24x32xf32> to vector<24x32xbf16>
    %c0_48 = arith.constant 0 : index
    %c0_49 = arith.constant 0 : index
    %54 = vector.load %arg13[%c0_48, %c0_49] : memref<24x576xbf16, #tpu.memory_space<vmem>>, vector<24x32xbf16>
    tpu.vector_store %arg13[%c0_48, %c0_49], %53 {strides = array<i32>} : memref<24x576xbf16, #tpu.memory_space<vmem>>, vector<24x32xbf16>,
    %c1_50 = arith.constant 1 : index
    %c0_51 = arith.constant 0 : index
    %55 = vector.load %arg11[%c1_50, %c0_51] : memref<42x32xf32, #tpu.memory_space<vmem>>, vector<24x32xf32>
    %56 = arith.truncf %55 : vector<24x32xf32> to vector<24x32xbf16>
    %c0_52 = arith.constant 0 : index
    %c32_53 = arith.constant 32 : index
    %57 = vector.load %arg13[%c0_52, %c32_53] : memref<24x576xbf16, #tpu.memory_space<vmem>>, vector<24x32xbf16>
    tpu.vector_store %arg13[%c0_52, %c32_53], %56 {strides = array<i32>} : memref<24x576xbf16, #tpu.memory_space<vmem>>, vector<24x32xbf16>,
    %c2_54 = arith.constant 2 : index
    %c0_55 = arith.constant 0 : index
    %58 = vector.load %arg11[%c2_54, %c0_55] : memref<42x32xf32, #tpu.memory_space<vmem>>, vector<24x32xf32>
    %59 = arith.truncf %58 : vector<24x32xf32> to vector<24x32xbf16>
    %c0_56 = arith.constant 0 : index
    %c64 = arith.constant 64 : index
    %60 = vector.load %arg13[%c0_56, %c64] : memref<24x576xbf16, #tpu.memory_space<vmem>>, vector<24x32xbf16>
    tpu.vector_store %arg13[%c0_56, %c64], %59 {strides = array<i32>} : memref<24x576xbf16, #tpu.memory_space<vmem>>, vector<24x32xbf16>,
    %c6_57 = arith.constant 6 : index
    %c0_58 = arith.constant 0 : index
    %61 = vector.load %arg11[%c6_57, %c0_58] : memref<42x32xf32, #tpu.memory_space<vmem>>, vector<24x32xf32>
    %62 = arith.truncf %61 : vector<24x32xf32> to vector<24x32xbf16>
    %c0_59 = arith.constant 0 : index
    %c96 = arith.constant 96 : index
    %63 = vector.load %arg13[%c0_59, %c96] : memref<24x576xbf16, #tpu.memory_space<vmem>>, vector<24x32xbf16>
    tpu.vector_store %arg13[%c0_59, %c96], %62 {strides = array<i32>} : memref<24x576xbf16, #tpu.memory_space<vmem>>, vector<24x32xbf16>,
    %c7_60 = arith.constant 7 : index
    %c0_61 = arith.constant 0 : index
    %64 = vector.load %arg11[%c7_60, %c0_61] : memref<42x32xf32, #tpu.memory_space<vmem>>, vector<24x32xf32>
    %65 = arith.truncf %64 : vector<24x32xf32> to vector<24x32xbf16>
    %c0_62 = arith.constant 0 : index
    %c128 = arith.constant 128 : index
    %66 = vector.load %arg13[%c0_62, %c128] : memref<24x576xbf16, #tpu.memory_space<vmem>>, vector<24x32xbf16>
    tpu.vector_store %arg13[%c0_62, %c128], %65 {strides = array<i32>} : memref<24x576xbf16, #tpu.memory_space<vmem>>, vector<24x32xbf16>,
    %c8_63 = arith.constant 8 : index
    %c0_64 = arith.constant 0 : index
    %67 = vector.load %arg11[%c8_63, %c0_64] : memref<42x32xf32, #tpu.memory_space<vmem>>, vector<24x32xf32>
    %68 = arith.truncf %67 : vector<24x32xf32> to vector<24x32xbf16>
    %c0_65 = arith.constant 0 : index
    %c160 = arith.constant 160 : index
    %69 = vector.load %arg13[%c0_65, %c160] : memref<24x576xbf16, #tpu.memory_space<vmem>>, vector<24x32xbf16>
    tpu.vector_store %arg13[%c0_65, %c160], %68 {strides = array<i32>} : memref<24x576xbf16, #tpu.memory_space<vmem>>, vector<24x32xbf16>,
    %c12_66 = arith.constant 12 : index
    %c0_67 = arith.constant 0 : index
    %70 = vector.load %arg11[%c12_66, %c0_67] : memref<42x32xf32, #tpu.memory_space<vmem>>, vector<24x32xf32>
    %71 = arith.truncf %70 : vector<24x32xf32> to vector<24x32xbf16>
    %c0_68 = arith.constant 0 : index
    %c192 = arith.constant 192 : index
    %72 = vector.load %arg13[%c0_68, %c192] : memref<24x576xbf16, #tpu.memory_space<vmem>>, vector<24x32xbf16>
    tpu.vector_store %arg13[%c0_68, %c192], %71 {strides = array<i32>} : memref<24x576xbf16, #tpu.memory_space<vmem>>, vector<24x32xbf16>,
    %c13_69 = arith.constant 13 : index
    %c0_70 = arith.constant 0 : index
    %73 = vector.load %arg11[%c13_69, %c0_70] : memref<42x32xf32, #tpu.memory_space<vmem>>, vector<24x32xf32>
    %74 = arith.truncf %73 : vector<24x32xf32> to vector<24x32xbf16>
    %c0_71 = arith.constant 0 : index
    %c224 = arith.constant 224 : index
    %75 = vector.load %arg13[%c0_71, %c224] : memref<24x576xbf16, #tpu.memory_space<vmem>>, vector<24x32xbf16>
    tpu.vector_store %arg13[%c0_71, %c224], %74 {strides = array<i32>} : memref<24x576xbf16, #tpu.memory_space<vmem>>, vector<24x32xbf16>,
    %c14_72 = arith.constant 14 : index
    %c0_73 = arith.constant 0 : index
    %76 = vector.load %arg11[%c14_72, %c0_73] : memref<42x32xf32, #tpu.memory_space<vmem>>, vector<24x32xf32>
    %77 = arith.truncf %76 : vector<24x32xf32> to vector<24x32xbf16>
    %c0_74 = arith.constant 0 : index
    %c256 = arith.constant 256 : index
    %78 = vector.load %arg13[%c0_74, %c256] : memref<24x576xbf16, #tpu.memory_space<vmem>>, vector<24x32xbf16>
    tpu.vector_store %arg13[%c0_74, %c256], %77 {strides = array<i32>} : memref<24x576xbf16, #tpu.memory_space<vmem>>, vector<24x32xbf16>,
    %c0_75 = arith.constant 0 : index
    %c0_76 = arith.constant 0 : index
    %79 = vector.load %arg13[%c0_75, %c0_76] : memref<24x576xbf16, #tpu.memory_space<vmem>>, vector<24x288xbf16>
    %c0_77 = arith.constant 0 : index
    %c0_78 = arith.constant 0 : index
    %80 = vector.load %arg4[%c0_77, %c0_78] : memref<288x64xbf16, #tpu.memory_space<vmem>>, vector<288x64xbf16>
    %cst_79 = arith.constant dense<0.000000e+00> : vector<24x64xf32>
    %81 = tpu.matmul %79, %80, %cst_79 {dimension_numbers = #tpu.dot_dimension_numbers<[1], [0], [0], [1], [0, 0, 1, 1], [], []>} : vector<24x288xbf16>, vector<288x64xbf16>, vector<24x64xf32> -> vector<24x64xf32>
    %c0_80 = arith.constant 0 : index
    %c0_81 = arith.constant 0 : index
    %82 = vector.load %arg5[%c0_80, %c0_81] : memref<1x64xf32, #tpu.memory_space<vmem>>, vector<1x64xf32>
    %83 = vector.broadcast %82 : vector<1x64xf32> to vector<24x64xf32>
    %84 = arith.addf %81, %83 : vector<24x64xf32>
    %cst_82 = arith.constant 0.000000e+00 : f32
    %85 = vector.broadcast %cst_82 : f32 to vector<24x64xf32>
    %86 = arith.maximumf %84, %85 : vector<24x64xf32>
    %87 = vector.broadcast %0 : vector<24x1xf32> to vector<24x64xf32>
    %88 = arith.mulf %86, %87 : vector<24x64xf32>
    %cst_83 = arith.constant 0.000000e+00 : f32
    %89 = vector.broadcast %cst_83 : f32 to vector<7x64xf32>
    %c0_84 = arith.constant 0 : index
    %c0_85 = arith.constant 0 : index
    %90 = vector.load %arg12[%c0_84, %c0_85] : memref<42x64xf32, #tpu.memory_space<vmem>>, vector<7x64xf32>
    tpu.vector_store %arg12[%c0_84, %c0_85], %89 {strides = array<i32>} : memref<42x64xf32, #tpu.memory_space<vmem>>, vector<7x64xf32>,
    %cst_86 = arith.constant 0.000000e+00 : f32
    %91 = vector.broadcast %cst_86 : f32 to vector<11x64xf32>
    %c31_87 = arith.constant 31 : index
    %c0_88 = arith.constant 0 : index
    %92 = vector.load %arg12[%c31_87, %c0_88] : memref<42x64xf32, #tpu.memory_space<vmem>>, vector<11x64xf32>
    tpu.vector_store %arg12[%c31_87, %c0_88], %91 {strides = array<i32>} : memref<42x64xf32, #tpu.memory_space<vmem>>, vector<11x64xf32>,
    %c7_89 = arith.constant 7 : index
    %c0_90 = arith.constant 0 : index
    %93 = vector.load %arg12[%c7_89, %c0_90] : memref<42x64xf32, #tpu.memory_space<vmem>>, vector<24x64xf32>
    tpu.vector_store %arg12[%c7_89, %c0_90], %88 {strides = array<i32>} : memref<42x64xf32, #tpu.memory_space<vmem>>, vector<24x64xf32>,
    %c0_91 = arith.constant 0 : index
    %c0_92 = arith.constant 0 : index
    %94 = vector.load %arg12[%c0_91, %c0_92] : memref<42x64xf32, #tpu.memory_space<vmem>>, vector<24x64xf32>
    %95 = arith.truncf %94 : vector<24x64xf32> to vector<24x64xbf16>
    %c0_93 = arith.constant 0 : index
    %c0_94 = arith.constant 0 : index
    %96 = vector.load %arg13[%c0_93, %c0_94] : memref<24x576xbf16, #tpu.memory_space<vmem>>, vector<24x64xbf16>
    tpu.vector_store %arg13[%c0_93, %c0_94], %95 {strides = array<i32>} : memref<24x576xbf16, #tpu.memory_space<vmem>>, vector<24x64xbf16>,
    %c1_95 = arith.constant 1 : index
    %c0_96 = arith.constant 0 : index
    %97 = vector.load %arg12[%c1_95, %c0_96] : memref<42x64xf32, #tpu.memory_space<vmem>>, vector<24x64xf32>
    %98 = arith.truncf %97 : vector<24x64xf32> to vector<24x64xbf16>
    %c0_97 = arith.constant 0 : index
    %c64_98 = arith.constant 64 : index
    %99 = vector.load %arg13[%c0_97, %c64_98] : memref<24x576xbf16, #tpu.memory_space<vmem>>, vector<24x64xbf16>
    tpu.vector_store %arg13[%c0_97, %c64_98], %98 {strides = array<i32>} : memref<24x576xbf16, #tpu.memory_space<vmem>>, vector<24x64xbf16>,
    %c2_99 = arith.constant 2 : index
    %c0_100 = arith.constant 0 : index
    %100 = vector.load %arg12[%c2_99, %c0_100] : memref<42x64xf32, #tpu.memory_space<vmem>>, vector<24x64xf32>
    %101 = arith.truncf %100 : vector<24x64xf32> to vector<24x64xbf16>
    %c0_101 = arith.constant 0 : index
    %c128_102 = arith.constant 128 : index
    %102 = vector.load %arg13[%c0_101, %c128_102] : memref<24x576xbf16, #tpu.memory_space<vmem>>, vector<24x64xbf16>
    tpu.vector_store %arg13[%c0_101, %c128_102], %101 {strides = array<i32>} : memref<24x576xbf16, #tpu.memory_space<vmem>>, vector<24x64xbf16>,
    %c6_103 = arith.constant 6 : index
    %c0_104 = arith.constant 0 : index
    %103 = vector.load %arg12[%c6_103, %c0_104] : memref<42x64xf32, #tpu.memory_space<vmem>>, vector<24x64xf32>
    %104 = arith.truncf %103 : vector<24x64xf32> to vector<24x64xbf16>
    %c0_105 = arith.constant 0 : index
    %c192_106 = arith.constant 192 : index
    %105 = vector.load %arg13[%c0_105, %c192_106] : memref<24x576xbf16, #tpu.memory_space<vmem>>, vector<24x64xbf16>
    tpu.vector_store %arg13[%c0_105, %c192_106], %104 {strides = array<i32>} : memref<24x576xbf16, #tpu.memory_space<vmem>>, vector<24x64xbf16>,
    %c7_107 = arith.constant 7 : index
    %c0_108 = arith.constant 0 : index
    %106 = vector.load %arg12[%c7_107, %c0_108] : memref<42x64xf32, #tpu.memory_space<vmem>>, vector<24x64xf32>
    %107 = arith.truncf %106 : vector<24x64xf32> to vector<24x64xbf16>
    %c0_109 = arith.constant 0 : index
    %c256_110 = arith.constant 256 : index
    %108 = vector.load %arg13[%c0_109, %c256_110] : memref<24x576xbf16, #tpu.memory_space<vmem>>, vector<24x64xbf16>
    tpu.vector_store %arg13[%c0_109, %c256_110], %107 {strides = array<i32>} : memref<24x576xbf16, #tpu.memory_space<vmem>>, vector<24x64xbf16>,
    %c8_111 = arith.constant 8 : index
    %c0_112 = arith.constant 0 : index
    %109 = vector.load %arg12[%c8_111, %c0_112] : memref<42x64xf32, #tpu.memory_space<vmem>>, vector<24x64xf32>
    %110 = arith.truncf %109 : vector<24x64xf32> to vector<24x64xbf16>
    %c0_113 = arith.constant 0 : index
    %c320 = arith.constant 320 : index
    %111 = vector.load %arg13[%c0_113, %c320] : memref<24x576xbf16, #tpu.memory_space<vmem>>, vector<24x64xbf16>
    tpu.vector_store %arg13[%c0_113, %c320], %110 {strides = array<i32>} : memref<24x576xbf16, #tpu.memory_space<vmem>>, vector<24x64xbf16>,
    %c12_114 = arith.constant 12 : index
    %c0_115 = arith.constant 0 : index
    %112 = vector.load %arg12[%c12_114, %c0_115] : memref<42x64xf32, #tpu.memory_space<vmem>>, vector<24x64xf32>
    %113 = arith.truncf %112 : vector<24x64xf32> to vector<24x64xbf16>
    %c0_116 = arith.constant 0 : index
    %c384 = arith.constant 384 : index
    %114 = vector.load %arg13[%c0_116, %c384] : memref<24x576xbf16, #tpu.memory_space<vmem>>, vector<24x64xbf16>
    tpu.vector_store %arg13[%c0_116, %c384], %113 {strides = array<i32>} : memref<24x576xbf16, #tpu.memory_space<vmem>>, vector<24x64xbf16>,
    %c13_117 = arith.constant 13 : index
    %c0_118 = arith.constant 0 : index
    %115 = vector.load %arg12[%c13_117, %c0_118] : memref<42x64xf32, #tpu.memory_space<vmem>>, vector<24x64xf32>
    %116 = arith.truncf %115 : vector<24x64xf32> to vector<24x64xbf16>
    %c0_119 = arith.constant 0 : index
    %c448 = arith.constant 448 : index
    %117 = vector.load %arg13[%c0_119, %c448] : memref<24x576xbf16, #tpu.memory_space<vmem>>, vector<24x64xbf16>
    tpu.vector_store %arg13[%c0_119, %c448], %116 {strides = array<i32>} : memref<24x576xbf16, #tpu.memory_space<vmem>>, vector<24x64xbf16>,
    %c14_120 = arith.constant 14 : index
    %c0_121 = arith.constant 0 : index
    %118 = vector.load %arg12[%c14_120, %c0_121] : memref<42x64xf32, #tpu.memory_space<vmem>>, vector<24x64xf32>
    %119 = arith.truncf %118 : vector<24x64xf32> to vector<24x64xbf16>
    %c0_122 = arith.constant 0 : index
    %c512 = arith.constant 512 : index
    %120 = vector.load %arg13[%c0_122, %c512] : memref<24x576xbf16, #tpu.memory_space<vmem>>, vector<24x64xbf16>
    tpu.vector_store %arg13[%c0_122, %c512], %119 {strides = array<i32>} : memref<24x576xbf16, #tpu.memory_space<vmem>>, vector<24x64xbf16>,
    %c0_123 = arith.constant 0 : index
    %c0_124 = arith.constant 0 : index
    %121 = vector.load %arg13[%c0_123, %c0_124] : memref<24x576xbf16, #tpu.memory_space<vmem>>, vector<24x576xbf16>
    %c0_125 = arith.constant 0 : index
    %c0_126 = arith.constant 0 : index
    %122 = vector.load %arg6[%c0_125, %c0_126] : memref<576x128xbf16, #tpu.memory_space<vmem>>, vector<576x128xbf16>
    %cst_127 = arith.constant dense<0.000000e+00> : vector<24x128xf32>
    %123 = tpu.matmul %121, %122, %cst_127 {dimension_numbers = #tpu.dot_dimension_numbers<[1], [0], [0], [1], [0, 0, 1, 1], [], []>} : vector<24x576xbf16>, vector<576x128xbf16>, vector<24x128xf32> -> vector<24x128xf32>
    %c0_128 = arith.constant 0 : index
    %c0_129 = arith.constant 0 : index
    %124 = vector.load %arg7[%c0_128, %c0_129] : memref<1x128xf32, #tpu.memory_space<vmem>>, vector<1x128xf32>
    %125 = vector.broadcast %124 : vector<1x128xf32> to vector<24x128xf32>
    %126 = arith.addf %123, %125 : vector<24x128xf32>
    %cst_130 = arith.constant 0.000000e+00 : f32
    %127 = vector.broadcast %cst_130 : f32 to vector<24x128xf32>
    %128 = arith.subf %127, %126 : vector<24x128xf32>
    %129 = math.exp %128 : vector<24x128xf32>
    %cst_131 = arith.constant 1.000000e+00 : f32
    %130 = vector.broadcast %cst_131 : f32 to vector<24x128xf32>
    %131 = arith.addf %130, %129 : vector<24x128xf32>
    %132 = tpu.reciprocal %131 {approx = true} : vector<24x128xf32> -> vector<24x128xf32>
    %c0_132 = arith.constant 0 : index
    %c0_133 = arith.constant 0 : index
    %133 = vector.load %arg9[%c0_132, %c0_133] : memref<1x128xf32, #tpu.memory_space<vmem>>, vector<1x128xf32>
    %cst_134 = arith.constant 5.000000e-01 : f32
    %134 = vector.broadcast %cst_134 : f32 to vector<1x128xf32>
    %135 = arith.cmpf ogt, %133, %134 : vector<1x128xf32>
    %136 = vector.shape_cast %135 : vector<1x128xi1> to vector<1x128xi1>
    %137 = vector.broadcast %136 : vector<1x128xi1> to vector<24x128xi1>
    %138 = arith.select %137, %132, %126 : vector<24x128xi1>, vector<24x128xf32>
    %c0_135 = arith.constant 0 : index
    %c0_136 = arith.constant 0 : index
    %c0_137 = arith.constant 0 : index
    %139 = vector.load %arg10[%c0_135, %c0_136, %c0_137] : memref<1x24x128xf32, #tpu.memory_space<vmem>>, vector<1x24x128xf32>
    %140 = vector.shape_cast %139 : vector<1x24x128xf32> to vector<24x128xf32>
    %141 = vector.shape_cast %138 : vector<24x128xf32> to vector<1x24x128xf32>
    tpu.vector_store %arg10[%c0_135, %c0_136, %c0_137], %141 {strides = array<i32>} : memref<1x24x128xf32, #tpu.memory_space<vmem>>, vector<1x24x128xf32>,
    return
  }
  func.func @transform_0(%arg0: i32) -> (i32, i32, i32) {
    %c0_i32 = arith.constant 0 : i32
    %c0_i32_0 = arith.constant 0 : i32
    %c0_i32_1 = arith.constant 0 : i32
    return %arg0, %c0_i32, %c0_i32_0 : i32, i32, i32
  }
  func.func @transform_1(%arg0: i32) -> (i32, i32) {
    %c0_i32 = arith.constant 0 : i32
    %c0_i32_0 = arith.constant 0 : i32
    %c0_i32_1 = arith.constant 0 : i32
    return %c0_i32, %c0_i32_0 : i32, i32
  }
  func.func @transform_2(%arg0: i32) -> (i32, i32) {
    %c0_i32 = arith.constant 0 : i32
    %c0_i32_0 = arith.constant 0 : i32
    %c0_i32_1 = arith.constant 0 : i32
    return %c0_i32, %c0_i32_0 : i32, i32
  }
  func.func @transform_3(%arg0: i32) -> (i32, i32) {
    %c0_i32 = arith.constant 0 : i32
    %c0_i32_0 = arith.constant 0 : i32
    %c0_i32_1 = arith.constant 0 : i32
    return %c0_i32, %c0_i32_0 : i32, i32
  }
  func.func @transform_4(%arg0: i32) -> (i32, i32) {
    %c0_i32 = arith.constant 0 : i32
    %c0_i32_0 = arith.constant 0 : i32
    %c0_i32_1 = arith.constant 0 : i32
    return %c0_i32, %c0_i32_0 : i32, i32
  }
  func.func @transform_5(%arg0: i32) -> (i32, i32) {
    %c0_i32 = arith.constant 0 : i32
    %c0_i32_0 = arith.constant 0 : i32
    %c0_i32_1 = arith.constant 0 : i32
    return %c0_i32, %c0_i32_0 : i32, i32
  }
  func.func @transform_6(%arg0: i32) -> (i32, i32) {
    %c0_i32 = arith.constant 0 : i32
    %c0_i32_0 = arith.constant 0 : i32
    %c0_i32_1 = arith.constant 0 : i32
    return %c0_i32, %c0_i32_0 : i32, i32
  }
  func.func @transform_7(%arg0: i32) -> (i32, i32) {
    %c0_i32 = arith.constant 0 : i32
    %c0_i32_0 = arith.constant 0 : i32
    %c0_i32_1 = arith.constant 0 : i32
    return %c0_i32, %c0_i32_0 : i32, i32
  }
  func.func @transform_8(%arg0: i32) -> (i32, i32) {
    %c0_i32 = arith.constant 0 : i32
    %c0_i32_0 = arith.constant 0 : i32
    %c0_i32_1 = arith.constant 0 : i32
    return %c0_i32, %c0_i32_0 : i32, i32
  }
  func.func @transform_9(%arg0: i32) -> (i32, i32, i32) {
    %c0_i32 = arith.constant 0 : i32
    %c0_i32_0 = arith.constant 0 : i32
    %c0_i32_1 = arith.constant 0 : i32
    return %arg0, %c0_i32, %c0_i32_0 : i32, i32, i32
  }
}

</mosaic_0001>

<llo_original>
// kernel: tpu_custom_call.1
$region0: #{tpu_custom_call.1}
  #allocation0 [shape = 'u32[]', space=smem, size = 0x4, offset = 0x4, fixed_abs, tag = 'smem constant byte address 0x4 - core index']
  #allocation1 [shape = 'u32[144,128]{1,0:T(1,128)}', space=vmem, size = 0x12000, scoped, tag = 'internal scratch']
  #allocation2 [shape = 'f32[42,32]{1,0:T(8,128)}', space=vmem, size = 0x6000, scoped, tag = 'scratch operand']
  #allocation3 [shape = 'f32[42,64]{1,0:T(8,128)}', space=vmem, size = 0x6000, scoped, tag = 'scratch operand']
  #allocation4 [shape = 'bf16[24,576]{1,0:T(8,128)(2,1)}', space=vmem, size = 0x7800, scoped, tag = 'scratch operand']
  %s0 = inlined_call_operand.vmem [shape: f32[2,42,4], index: 0, kind: input, shape index: {}]
  %s1 = inlined_call_operand.vmem [shape: bf16[36,32], index: 1, kind: input, shape index: {}]
  %s2 = inlined_call_operand.vmem [shape: f32[1,32], index: 2, kind: input, shape index: {}]
  %s3 = inlined_call_operand.vmem [shape: bf16[288,64], index: 3, kind: input, shape index: {}]
  %s4 = inlined_call_operand.vmem [shape: f32[1,64], index: 4, kind: input, shape index: {}]
  %s5 = inlined_call_operand.vmem [shape: bf16[576,128], index: 5, kind: input, shape index: {}]
  %s6 = inlined_call_operand.vmem [shape: f32[1,128], index: 6, kind: input, shape index: {}]
  %s7 = inlined_call_operand.vmem [shape: f32[24,1], index: 7, kind: input, shape index: {}]
  %s8 = inlined_call_operand.vmem [shape: f32[1,128], index: 8, kind: input, shape index: {}]
  %s9 = inlined_call_operand.hbm [shape: f32[2,24,128], index: 9, kind: output, shape index: {}]
  %s10 = sld [smem:[#allocation0]]
  $region69: #{tpu_custom_call.1} parent=0
    _
  %s12 = ssub.s32 1, %s10
  %s13 = scalar_select 0, %s12, %s10
  $region1: #{tpu_custom_call.1} parent=0
    #allocation5 [shape = 'u8[24576]{0}', space=vmem, size = 0x6000, scoped, tag = 'output window, operand 0']
    #allocation6 [shape = 's32[2]{0}', space=sflag, size = 0x8, scoped, tag = 'scoped memory for tpu_custom_call.1']
    %14 = vsyncpa [#allocation6], 0
    %s15 = scalar_lea.sflag [#allocation6], 1
    %16 = vsyncpa %s15, 0
    loop: start=0, step=1, limit=4
    $region2: #{tpu_custom_call.1} parent=1 // loop_pre_header
      _
    $region3: #{tpu_custom_call.1} parent=1 // loop_header
      %s18 = sphi 0, %s22
      %p19 = scmp.ge.s32.totalorder %s18, 4
      %s28 = sphi 0, %s30
      %s31 = sphi 0, %s28
      %s32 = sphi 0, %s31
      %s48 = sphi 0, %s32
      %s52 = sphi 0, %s52
      %s54 = sphi 0, %s52
      %s55 = sphi 0, %s54
      %s69 = sphi 0, %s55
      %s73 = sphi 0, %s73
      %s75 = sphi 0, %s73
      %s76 = sphi 0, %s75
      %s90 = sphi 0, %s76
      %s94 = sphi 0, %s94
      %s96 = sphi 0, %s94
      %s97 = sphi 0, %s96
      %s111 = sphi 0, %s97
      %s115 = sphi 0, %s115
      %s117 = sphi 0, %s115
      %s118 = sphi 0, %s117
      %s132 = sphi 0, %s118
      %s136 = sphi 0, %s136
      %s138 = sphi 0, %s136
      %s139 = sphi 0, %s138
      %s153 = sphi 0, %s139
      %s157 = sphi 0, %s157
      %s159 = sphi 0, %s157
      %s160 = sphi 0, %s159
      %s174 = sphi 0, %s160
      %s178 = sphi 0, %s178
      %s180 = sphi 0, %s178
      %s181 = sphi 0, %s180
      %s195 = sphi 0, %s181
      %s199 = sphi 0, %s199
      %s201 = sphi 0, %s199
      %s202 = sphi 0, %s201
      %s216 = sphi 0, %s202
      %s222 = sphi 0, %s224
      %s225 = sphi 0, %s222
      %s226 = sphi 0, %s225
      %s242 = sphi 0, %s226
    $region4: #{tpu_custom_call.1} parent=1 // loop_header_branch
      %21 = sbr.rel (%p19) target = $region8
    $region5: #{tpu_custom_call.1} parent=1 // loop_body
      %s23 = ssub.s32 %s18, 1
      %s24 = ssub.s32 %s18, 2
      %s25 = sadd.s32 %s18, 1
      %s26 = ssub.s32 %s18, %s25
      %p27 = scmp.eq.s32.totalorder %s26, 0
      %s29 = sadd.s32 %s28, 1
      %s30 = scalar_select %p27, %s28, %s29
      %p33 = pneg %p27
      %p34 = scmp.eq.s32.totalorder %s18, 1
      %p35 = por %p33, %p34
      %p36 = scmp.ne.s32.totalorder %s28, %s31
      %p37 = scmp.eq.s32.totalorder %s18, 0
      %p38 = por %p36, %p37
      %p39 = scmp.ne.s32.totalorder %s28, %s31
      %p40 = scmp.eq.s32.totalorder %s23, 1
      %p41 = por %p39, %p40
      %p42 = scmp.ne.s32.totalorder %s31, %s32
      %p43 = scmp.eq.s32.totalorder %s23, 0
      %p44 = por %p42, %p43
      %p45 = scmp.ne.s32.totalorder %s31, %s32
      %p46 = scmp.eq.s32.totalorder %s24, 1
      %p47 = por %p45, %p46
      %p49 = scmp.ne.s32.totalorder %s32, %s48
      %p50 = scmp.eq.s32.totalorder %s24, 0
      %p51 = por %p49, %p50
      %s53 = sadd.s32 %s52, 1
      %p56 = scmp.eq.s32.totalorder %s18, 1
      %p57 = scmp.ne.s32.totalorder %s52, %s54
      %p58 = scmp.eq.s32.totalorder %s18, 0
      %p59 = por %p57, %p58
      %p60 = scmp.ne.s32.totalorder %s52, %s54
      %p61 = scmp.eq.s32.totalorder %s23, 1
      %p62 = por %p60, %p61
      %p63 = scmp.ne.s32.totalorder %s54, %s55
      %p64 = scmp.eq.s32.totalorder %s23, 0
      %p65 = por %p63, %p64
      %p66 = scmp.ne.s32.totalorder %s54, %s55
      %p67 = scmp.eq.s32.totalorder %s24, 1
      %p68 = por %p66, %p67
      %p70 = scmp.ne.s32.totalorder %s55, %s69
      %p71 = scmp.eq.s32.totalorder %s24, 0
      %p72 = por %p70, %p71
      %s74 = sadd.s32 %s73, 1
      %p77 = scmp.eq.s32.totalorder %s18, 1
      %p78 = scmp.ne.s32.totalorder %s73, %s75
      %p79 = scmp.eq.s32.totalorder %s18, 0
      %p80 = por %p78, %p79
      %p81 = scmp.ne.s32.totalorder %s73, %s75
      %p82 = scmp.eq.s32.totalorder %s23, 1
      %p83 = por %p81, %p82
      %p84 = scmp.ne.s32.totalorder %s75, %s76
      %p85 = scmp.eq.s32.totalorder %s23, 0
      %p86 = por %p84, %p85
      %p87 = scmp.ne.s32.totalorder %s75, %s76
      %p88 = scmp.eq.s32.totalorder %s24, 1
      %p89 = por %p87, %p88
      %p91 = scmp.ne.s32.totalorder %s76, %s90
      %p92 = scmp.eq.s32.totalorder %s24, 0
      %p93 = por %p91, %p92
      %s95 = sadd.s32 %s94, 1
      %p98 = scmp.eq.s32.totalorder %s18, 1
      %p99 = scmp.ne.s32.totalorder %s94, %s96
      %p100 = scmp.eq.s32.totalorder %s18, 0
      %p101 = por %p99, %p100
      %p102 = scmp.ne.s32.totalorder %s94, %s96
      %p103 = scmp.eq.s32.totalorder %s23, 1
      %p104 = por %p102, %p103
      %p105 = scmp.ne.s32.totalorder %s96, %s97
      %p106 = scmp.eq.s32.totalorder %s23, 0
      %p107 = por %p105, %p106
      %p108 = scmp.ne.s32.totalorder %s96, %s97
      %p109 = scmp.eq.s32.totalorder %s24, 1
      %p110 = por %p108, %p109
      %p112 = scmp.ne.s32.totalorder %s97, %s111
      %p113 = scmp.eq.s32.totalorder %s24, 0
      %p114 = por %p112, %p113
      %s116 = sadd.s32 %s115, 1
      %p119 = scmp.eq.s32.totalorder %s18, 1
      %p120 = scmp.ne.s32.totalorder %s115, %s117
      %p121 = scmp.eq.s32.totalorder %s18, 0
      %p122 = por %p120, %p121
      %p123 = scmp.ne.s32.totalorder %s115, %s117
      %p124 = scmp.eq.s32.totalorder %s23, 1
      %p125 = por %p123, %p124
      %p126 = scmp.ne.s32.totalorder %s117, %s118
      %p127 = scmp.eq.s32.totalorder %s23, 0
      %p128 = por %p126, %p127
      %p129 = scmp.ne.s32.totalorder %s117, %s118
      %p130 = scmp.eq.s32.totalorder %s24, 1
      %p131 = por %p129, %p130
      %p133 = scmp.ne.s32.totalorder %s118, %s132
      %p134 = scmp.eq.s32.totalorder %s24, 0
      %p135 = por %p133, %p134
      %s137 = sadd.s32 %s136, 1
      %p140 = scmp.eq.s32.totalorder %s18, 1
      %p141 = scmp.ne.s32.totalorder %s136, %s138
      %p142 = scmp.eq.s32.totalorder %s18, 0
      %p143 = por %p141, %p142
      %p144 = scmp.ne.s32.totalorder %s136, %s138
      %p145 = scmp.eq.s32.totalorder %s23, 1
      %p146 = por %p144, %p145
      %p147 = scmp.ne.s32.totalorder %s138, %s139
      %p148 = scmp.eq.s32.totalorder %s23, 0
      %p149 = por %p147, %p148
      %p150 = scmp.ne.s32.totalorder %s138, %s139
      %p151 = scmp.eq.s32.totalorder %s24, 1
      %p152 = por %p150, %p151
      %p154 = scmp.ne.s32.totalorder %s139, %s153
      %p155 = scmp.eq.s32.totalorder %s24, 0
      %p156 = por %p154, %p155
      %s158 = sadd.s32 %s157, 1
      %p161 = scmp.eq.s32.totalorder %s18, 1
      %p162 = scmp.ne.s32.totalorder %s157, %s159
      %p163 = scmp.eq.s32.totalorder %s18, 0
      %p164 = por %p162, %p163
      %p165 = scmp.ne.s32.totalorder %s157, %s159
      %p166 = scmp.eq.s32.totalorder %s23, 1
      %p167 = por %p165, %p166
      %p168 = scmp.ne.s32.totalorder %s159, %s160
      %p169 = scmp.eq.s32.totalorder %s23, 0
      %p170 = por %p168, %p169
      %p171 = scmp.ne.s32.totalorder %s159, %s160
      %p172 = scmp.eq.s32.totalorder %s24, 1
      %p173 = por %p171, %p172
      %p175 = scmp.ne.s32.totalorder %s160, %s174
      %p176 = scmp.eq.s32.totalorder %s24, 0
      %p177 = por %p175, %p176
      %s179 = sadd.s32 %s178, 1
      %p182 = scmp.eq.s32.totalorder %s18, 1
      %p183 = scmp.ne.s32.totalorder %s178, %s180
      %p184 = scmp.eq.s32.totalorder %s18, 0
      %p185 = por %p183, %p184
      %p186 = scmp.ne.s32.totalorder %s178, %s180
      %p187 = scmp.eq.s32.totalorder %s23, 1
      %p188 = por %p186, %p187
      %p189 = scmp.ne.s32.totalorder %s180, %s181
      %p190 = scmp.eq.s32.totalorder %s23, 0
      %p191 = por %p189, %p190
      %p192 = scmp.ne.s32.totalorder %s180, %s181
      %p193 = scmp.eq.s32.totalorder %s24, 1
      %p194 = por %p192, %p193
      %p196 = scmp.ne.s32.totalorder %s181, %s195
      %p197 = scmp.eq.s32.totalorder %s24, 0
      %p198 = por %p196, %p197
      %s200 = sadd.s32 %s199, 1
      %p203 = scmp.eq.s32.totalorder %s18, 1
      %p204 = scmp.ne.s32.totalorder %s199, %s201
      %p205 = scmp.eq.s32.totalorder %s18, 0
      %p206 = por %p204, %p205
      %p207 = scmp.ne.s32.totalorder %s199, %s201
      %p208 = scmp.eq.s32.totalorder %s23, 1
      %p209 = por %p207, %p208
      %p210 = scmp.ne.s32.totalorder %s201, %s202
      %p211 = scmp.eq.s32.totalorder %s23, 0
      %p212 = por %p210, %p211
      %p213 = scmp.ne.s32.totalorder %s201, %s202
      %p214 = scmp.eq.s32.totalorder %s24, 1
      %p215 = por %p213, %p214
      %p217 = scmp.ne.s32.totalorder %s202, %s216
      %p218 = scmp.eq.s32.totalorder %s24, 0
      %p219 = por %p217, %p218
      %s220 = ssub.s32 %s18, %s25
      %p221 = scmp.eq.s32.totalorder %s220, 0
      %s223 = sadd.s32 %s222, 1
      %s224 = scalar_select %p221, %s222, %s223
      %p227 = pneg %p221
      %p228 = scmp.eq.s32.totalorder %s18, 1
      %p229 = por %p227, %p228
      %p230 = scmp.ne.s32.totalorder %s222, %s225
      %p231 = scmp.eq.s32.totalorder %s18, 0
      %p232 = por %p230, %p231
      %p233 = scmp.ne.s32.totalorder %s222, %s225
      %p234 = scmp.eq.s32.totalorder %s23, 1
      %p235 = por %p233, %p234
      %p236 = scmp.ne.s32.totalorder %s225, %s226
      %p237 = scmp.eq.s32.totalorder %s23, 0
      %p238 = por %p236, %p237
      %p239 = scmp.ne.s32.totalorder %s225, %s226
      %p240 = scmp.eq.s32.totalorder %s24, 1
      %p241 = por %p239, %p240
      %p243 = scmp.ne.s32.totalorder %s226, %s242
      %p244 = scmp.eq.s32.totalorder %s24, 0
      %p245 = por %p243, %p244
      %p246 = scmp.le.s32.totalorder 1, %s18
      %p247 = scmp.lt.s32.totalorder %s18, 3
      %p248 = pnand %p246, %p247
      %p249 = pneg %p248
      // Predicated region
      $region9: #{tpu_custom_call.1} parent=5 // pred_check
        _
      $region10: #{tpu_custom_call.1} parent=5 // pred_check_branch
        %251 = sbr.rel (%p248) target = $region12
      $region11: #{tpu_custom_call.1} parent=5 // pred_region
        %s252 = ssub.s32 %s18, 1
        // Predicated region
        $region13: #{tpu_custom_call.1} parent=11 // pred_check
          %p253 = pneg %p65
        $region14: #{tpu_custom_call.1} parent=11 // pred_check_branch
          %255 = sbr.rel (%p253) target = $region16
        $region15: #{tpu_custom_call.1} parent=11 // pred_region
          _
        $region16: #{tpu_custom_call.1} parent=11 // pred_fallthru
          _
        // Predicated region
        $region17: #{tpu_custom_call.1} parent=11 // pred_check
          %p256 = pneg %p86
        $region18: #{tpu_custom_call.1} parent=11 // pred_check_branch
          %258 = sbr.rel (%p256) target = $region20
        $region19: #{tpu_custom_call.1} parent=11 // pred_region
          _
        $region20: #{tpu_custom_call.1} parent=11 // pred_fallthru
          _
        // Predicated region
        $region21: #{tpu_custom_call.1} parent=11 // pred_check
          %p259 = pneg %p107
        $region22: #{tpu_custom_call.1} parent=11 // pred_check_branch
          %261 = sbr.rel (%p259) target = $region24
        $region23: #{tpu_custom_call.1} parent=11 // pred_region
          _
        $region24: #{tpu_custom_call.1} parent=11 // pred_fallthru
          _
        // Predicated region
        $region25: #{tpu_custom_call.1} parent=11 // pred_check
          %p262 = pneg %p128
        $region26: #{tpu_custom_call.1} parent=11 // pred_check_branch
          %264 = sbr.rel (%p262) target = $region28
        $region27: #{tpu_custom_call.1} parent=11 // pred_region
          _
        $region28: #{tpu_custom_call.1} parent=11 // pred_fallthru
          _
        // Predicated region
        $region29: #{tpu_custom_call.1} parent=11 // pred_check
          %p265 = pneg %p149
        $region30: #{tpu_custom_call.1} parent=11 // pred_check_branch
          %267 = sbr.rel (%p265) target = $region32
        $region31: #{tpu_custom_call.1} parent=11 // pred_region
          _
        $region32: #{tpu_custom_call.1} parent=11 // pred_fallthru
          _
        // Predicated region
        $region33: #{tpu_custom_call.1} parent=11 // pred_check
          %p268 = pneg %p170
        $region34: #{tpu_custom_call.1} parent=11 // pred_check_branch
          %270 = sbr.rel (%p268) target = $region36
        $region35: #{tpu_custom_call.1} parent=11 // pred_region
          _
        $region36: #{tpu_custom_call.1} parent=11 // pred_fallthru
          _
        // Predicated region
        $region37: #{tpu_custom_call.1} parent=11 // pred_check
          %p271 = pneg %p191
        $region38: #{tpu_custom_call.1} parent=11 // pred_check_branch
          %273 = sbr.rel (%p271) target = $region40
        $region39: #{tpu_custom_call.1} parent=11 // pred_region
          _
        $region40: #{tpu_custom_call.1} parent=11 // pred_fallthru
          _
        // Predicated region
        $region41: #{tpu_custom_call.1} parent=11 // pred_check
          %p274 = pneg %p212
        $region42: #{tpu_custom_call.1} parent=11 // pred_check_branch
          %276 = sbr.rel (%p274) target = $region44
        $region43: #{tpu_custom_call.1} parent=11 // pred_region
          _
        $region44: #{tpu_custom_call.1} parent=11 // pred_fallthru
          _
      $region12: #{tpu_custom_call.1} parent=5 // pred_fallthru
        _
      %p277 = scmp.lt.s32.totalorder %s18, 2
      // Predicated region
      $region45: #{tpu_custom_call.1} parent=5 // pred_check
        %p278 = pneg %p277
      $region46: #{tpu_custom_call.1} parent=5 // pred_check_branch
        %280 = sbr.rel (%p278) target = $region48
      $region47: #{tpu_custom_call.1} parent=5 // pred_region
        // Predicated region
        $region49: #{tpu_custom_call.1} parent=47 // pred_check
          %p281 = pneg %p38
        $region50: #{tpu_custom_call.1} parent=47 // pred_check_branch
          %283 = sbr.rel (%p281) target = $region52
        $region51: #{tpu_custom_call.1} parent=47 // pred_region
          %p284 = scmp.lt.s32.totalorder %s18, 1
          %s285 = scalar_select %p284, %s18, 1
          %s286 = smul.addr %s285, 6
          %s287 = smul.addr %s286, 8
          %s288 = scalar_lea.vmem %s0, %s287
        $region52: #{tpu_custom_call.1} parent=47 // pred_fallthru
          _
      $region48: #{tpu_custom_call.1} parent=5 // pred_fallthru
        _
      %p289 = scmp.le.s32.totalorder 1, %s18
      %p290 = scmp.lt.s32.totalorder %s18, 3
      %p291 = pnand %p289, %p290
      %p292 = pneg %p291
      // Predicated region
      $region53: #{tpu_custom_call.1} parent=5 // pred_check
        _
      $region54: #{tpu_custom_call.1} parent=5 // pred_check_branch
        %294 = sbr.rel (%p291) target = $region56
      $region55: #{tpu_custom_call.1} parent=5 // pred_region
        %s295 = ssub.s32 %s18, 1
        %p296 = scmp.lt.s32.totalorder %s23, 1
        %s297 = scalar_select %p296, %s23, 1
        %s298 = smul.addr %s297, 6
        %s299 = smul.addr %s298, 8
        %s300 = scalar_lea.vmem %s0, %s299
        %p301 = pneg %p44
        %p302 = pneg %p41
        %p303 = pneg %p65
        %p304 = pneg %p62
        %p305 = pneg %p86
        %p306 = pneg %p83
        %p307 = pneg %p107
        %p308 = pneg %p104
        %p309 = pneg %p128
        %p310 = pneg %p125
        %p311 = pneg %p149
        %p312 = pneg %p146
        %p313 = pneg %p170
        %p314 = pneg %p167
        %p315 = pneg %p191
        %p316 = pneg %p188
        %p317 = pneg %p212
        %p318 = pneg %p209
        %p319 = pneg %p238
        %p320 = pneg %p235
        %s321 = sand.u32 %s225, 1
        %s322 = scalar_lea.sflag [#allocation6], %s321
        %s323 = sand.u32 %s225, 1
        %s324 = smul.addr %s323, 24
        %s325 = scalar_lea.vmem [#allocation5], %s324
        %p326 = scmp.lt.s32.totalorder %s23, 1
        %s327 = scalar_select %p326, %s23, 1
        %s328 = smul.addr %s327, 6
        %s329 = smul.addr %s328, 8
        %s330 = scalar_lea.vmem %s0, %s329
        %v332 = vld [vmem:[%s7] sm:$0xff]
        %v333 = vld [vmem:[%s7 + $0x8] sm:$0xff]
        %v334 = vld [vmem:[%s7 + $0x10] sm:$0xff]
        %v335 = vld [vmem:[%s330] sm:$0xff]
        %v336 = vld [vmem:[%s330 + $0x8] sm:$0xff]
        %v337 = vld [vmem:[%s330 + $0x10] sm:$0xff]
        %v338 = vpack.c.bf16 %v336, %v335
        %v339 = vpack.c.bf16 %v337, %v337
        %v342 = vunpack.c.l.b16 %v338
        %v343 = vunpack.c.h.b16 %v338
        %v344 = vunpack.c.l.b16 %v339
        %v345 = vpack.c.b16 %v342, %v342
        %v346 = vpack.c.b16 %v343, %v343
        %v347 = vpack.c.b16 %v344, %v344
        %vm351 = vcmask 27648
        %352 = vst.msk [vmem:[#allocation4] sm:$0xf] %vm351, %v345
        %353 = vst.msk [vmem:[#allocation4 + $0x14] sm:$0xf] %vm351, %v346
        %354 = vst.msk [vmem:[#allocation4 + $0x28] sm:$0xf] %vm351, %v347
        %v355 = vld [vmem:[%s330 + $0x1] sm:$0xff]
        %v356 = vld [vmem:[%s330 + $0x9] sm:$0xff]
        %v357 = vld [vmem:[%s330 + $0x11] sm:$0xff]
        %v358 = vpack.c.bf16 %v356, %v355
        %v359 = vpack.c.bf16 %v357, %v357
        %v362 = vunpack.c.l.b16 %v358
        %v363 = vunpack.c.h.b16 %v358
        %v364 = vunpack.c.l.b16 %v359
        %v365 = vpack.c.b16 %v362, %v362
        %v366 = vpack.c.b16 %v363, %v363
        %v367 = vpack.c.b16 %v364, %v364
        %368 = vrot.lane.b32.xlu0 %v365, 4
        %v369 = vpop.permute.xlu0 %368
        %370 = vrot.lane.b32.xlu0 %v366, 4
        %v371 = vpop.permute.xlu0 %370
        %372 = vrot.lane.b32.xlu0 %v367, 4
        %v373 = vpop.permute.xlu0 %372
        %vm377 = vcmask 60448
        %378 = vst.msk [vmem:[#allocation4] sm:$0xf] %vm377, %v369
        %379 = vst.msk [vmem:[#allocation4 + $0x14] sm:$0xf] %vm377, %v371
        %380 = vst.msk [vmem:[#allocation4 + $0x28] sm:$0xf] %vm377, %v373
        %v381 = vld [vmem:[%s330 + $0x2] sm:$0xff]
        %v382 = vld [vmem:[%s330 + $0xa] sm:$0xff]
        %v383 = vld [vmem:[%s330 + $0x12] sm:$0xff]
        %v384 = vpack.c.bf16 %v382, %v381
        %v385 = vpack.c.bf16 %v383, %v383
        %v388 = vunpack.c.l.b16 %v384
        %v389 = vunpack.c.h.b16 %v384
        %v390 = vunpack.c.l.b16 %v385
        %v391 = vpack.c.b16 %v388, %v388
        %v392 = vpack.c.b16 %v389, %v389
        %v393 = vpack.c.b16 %v390, %v390
        %394 = vrot.lane.b32.xlu0 %v391, 8
        %v395 = vpop.permute.xlu0 %394
        %396 = vrot.lane.b32.xlu0 %v392, 8
        %v397 = vpop.permute.xlu0 %396
        %398 = vrot.lane.b32.xlu0 %v393, 8
        %v399 = vpop.permute.xlu0 %398
        %vm403 = vcmask 93248
        %404 = vst.msk [vmem:[#allocation4] sm:$0xf] %vm403, %v395
        %405 = vst.msk [vmem:[#allocation4 + $0x14] sm:$0xf] %vm403, %v397
        %406 = vst.msk [vmem:[#allocation4 + $0x28] sm:$0xf] %vm403, %v399
        %v407 = vld [vmem:[%s330 + $0x6] sm:$0xff]
        %v408 = vld [vmem:[%s330 + $0xe] sm:$0xff]
        %v409 = vld [vmem:[%s330 + $0x16] sm:$0xff]
        %v410 = vpack.c.bf16 %v408, %v407
        %v411 = vpack.c.bf16 %v409, %v409
        %v414 = vunpack.c.l.b16 %v410
        %v415 = vunpack.c.h.b16 %v410
        %v416 = vunpack.c.l.b16 %v411
        %v417 = vpack.c.b16 %v414, %v414
        %v418 = vpack.c.b16 %v415, %v415
        %v419 = vpack.c.b16 %v416, %v416
        %420 = vrot.lane.b32.xlu0 %v417, 12
        %v421 = vpop.permute.xlu0 %420
        %422 = vrot.lane.b32.xlu0 %v418, 12
        %v423 = vpop.permute.xlu0 %422
        %424 = vrot.lane.b32.xlu0 %v419, 12
        %v425 = vpop.permute.xlu0 %424
        %vm429 = vcmask 126048
        %430 = vst.msk [vmem:[#allocation4] sm:$0xf] %vm429, %v421
        %431 = vst.msk [vmem:[#allocation4 + $0x14] sm:$0xf] %vm429, %v423
        %432 = vst.msk [vmem:[#allocation4 + $0x28] sm:$0xf] %vm429, %v425
        %v433 = vld [vmem:[%s330 + $0x7] sm:$0xff]
        %v434 = vld [vmem:[%s330 + $0xf] sm:$0xff]
        %v435 = vld [vmem:[%s330 + $0x17] sm:$0xff]
        %v436 = vpack.c.bf16 %v434, %v433
        %v437 = vpack.c.bf16 %v435, %v435
        %v440 = vunpack.c.l.b16 %v436
        %v441 = vunpack.c.h.b16 %v436
        %v442 = vunpack.c.l.b16 %v437
        %v443 = vpack.c.b16 %v440, %v440
        %v444 = vpack.c.b16 %v441, %v441
        %v445 = vpack.c.b16 %v442, %v442
        %446 = vrot.lane.b32.xlu0 %v443, 16
        %v447 = vpop.permute.xlu0 %446
        %448 = vrot.lane.b32.xlu0 %v444, 16
        %v449 = vpop.permute.xlu0 %448
        %450 = vrot.lane.b32.xlu0 %v445, 16
        %v451 = vpop.permute.xlu0 %450
        %vm455 = vcmask 158848
        %456 = vst.msk [vmem:[#allocation4] sm:$0xf] %vm455, %v447
        %457 = vst.msk [vmem:[#allocation4 + $0x14] sm:$0xf] %vm455, %v449
        %458 = vst.msk [vmem:[#allocation4 + $0x28] sm:$0xf] %vm455, %v451
        %v459 = vld [vmem:[%s330 + $0x8] sm:$0xff]
        %v460 = vld [vmem:[%s330 + $0x10] sm:$0xff]
        %v461 = vld [vmem:[%s330 + $0x18] sm:$0xff]
        %v462 = vpack.c.bf16 %v460, %v459
        %v463 = vpack.c.bf16 %v461, %v461
        %v466 = vunpack.c.l.b16 %v462
        %v467 = vunpack.c.h.b16 %v462
        %v468 = vunpack.c.l.b16 %v463
        %v469 = vpack.c.b16 %v466, %v466
        %v470 = vpack.c.b16 %v467, %v467
        %v471 = vpack.c.b16 %v468, %v468
        %472 = vrot.lane.b32.xlu0 %v469, 20
        %v473 = vpop.permute.xlu0 %472
        %474 = vrot.lane.b32.xlu0 %v470, 20
        %v475 = vpop.permute.xlu0 %474
        %476 = vrot.lane.b32.xlu0 %v471, 20
        %v477 = vpop.permute.xlu0 %476
        %vm481 = vcmask 191648
        %482 = vst.msk [vmem:[#allocation4] sm:$0xf] %vm481, %v473
        %483 = vst.msk [vmem:[#allocation4 + $0x14] sm:$0xf] %vm481, %v475
        %484 = vst.msk [vmem:[#allocation4 + $0x28] sm:$0xf] %vm481, %v477
        %v485 = vld [vmem:[%s330 + $0xc] sm:$0xff]
        %v486 = vld [vmem:[%s330 + $0x14] sm:$0xff]
        %v487 = vld [vmem:[%s330 + $0x1c] sm:$0xff]
        %v488 = vpack.c.bf16 %v486, %v485
        %v489 = vpack.c.bf16 %v487, %v487
        %v492 = vunpack.c.l.b16 %v488
        %v493 = vunpack.c.h.b16 %v488
        %v494 = vunpack.c.l.b16 %v489
        %v495 = vpack.c.b16 %v492, %v492
        %v496 = vpack.c.b16 %v493, %v493
        %v497 = vpack.c.b16 %v494, %v494
        %498 = vrot.lane.b32.xlu0 %v495, 24
        %v499 = vpop.permute.xlu0 %498
        %500 = vrot.lane.b32.xlu0 %v496, 24
        %v501 = vpop.permute.xlu0 %500
        %502 = vrot.lane.b32.xlu0 %v497, 24
        %v503 = vpop.permute.xlu0 %502
        %vm507 = vcmask 224448
        %508 = vst.msk [vmem:[#allocation4] sm:$0xf] %vm507, %v499
        %509 = vst.msk [vmem:[#allocation4 + $0x14] sm:$0xf] %vm507, %v501
        %510 = vst.msk [vmem:[#allocation4 + $0x28] sm:$0xf] %vm507, %v503
        %v511 = vld [vmem:[%s330 + $0xd] sm:$0xff]
        %v512 = vld [vmem:[%s330 + $0x15] sm:$0xff]
        %v513 = vld [vmem:[%s330 + $0x1d] sm:$0xff]
        %v514 = vpack.c.bf16 %v512, %v511
        %v515 = vpack.c.bf16 %v513, %v513
        %v518 = vunpack.c.l.b16 %v514
        %v519 = vunpack.c.h.b16 %v514
        %v520 = vunpack.c.l.b16 %v515
        %v521 = vpack.c.b16 %v518, %v518
        %v522 = vpack.c.b16 %v519, %v519
        %v523 = vpack.c.b16 %v520, %v520
        %524 = vrot.lane.b32.xlu0 %v521, 28
        %v525 = vpop.permute.xlu0 %524
        %526 = vrot.lane.b32.xlu0 %v522, 28
        %v527 = vpop.permute.xlu0 %526
        %528 = vrot.lane.b32.xlu0 %v523, 28
        %v529 = vpop.permute.xlu0 %528
        %vm533 = vcmask 257248
        %534 = vst.msk [vmem:[#allocation4] sm:$0xf] %vm533, %v525
        %535 = vst.msk [vmem:[#allocation4 + $0x14] sm:$0xf] %vm533, %v527
        %536 = vst.msk [vmem:[#allocation4 + $0x28] sm:$0xf] %vm533, %v529
        %v537 = vld [vmem:[%s330 + $0xe] sm:$0xff]
        %v538 = vld [vmem:[%s330 + $0x16] sm:$0xff]
        %v539 = vld [vmem:[%s330 + $0x1e] sm:$0xff]
        %v540 = vpack.c.bf16 %v538, %v537
        %v541 = vpack.c.bf16 %v539, %v539
        %v544 = vunpack.c.l.b16 %v540
        %v545 = vunpack.c.h.b16 %v540
        %v546 = vunpack.c.l.b16 %v541
        %v547 = vpack.c.b16 %v544, %v544
        %v548 = vpack.c.b16 %v545, %v545
        %v549 = vpack.c.b16 %v546, %v546
        %550 = vrot.lane.b32.xlu0 %v547, 32
        %v551 = vpop.permute.xlu0 %550
        %552 = vrot.lane.b32.xlu0 %v548, 32
        %v553 = vpop.permute.xlu0 %552
        %554 = vrot.lane.b32.xlu0 %v549, 32
        %v555 = vpop.permute.xlu0 %554
        %vm559 = vcmask 290048
        %560 = vst.msk [vmem:[#allocation4] sm:$0xf] %vm559, %v551
        %561 = vst.msk [vmem:[#allocation4 + $0x14] sm:$0xf] %vm559, %v553
        %562 = vst.msk [vmem:[#allocation4 + $0x28] sm:$0xf] %vm559, %v555
        %v563 = vld [vmem:[#allocation4] sm:$0xf]
        %v564 = vld [vmem:[#allocation4 + $0x14] sm:$0xf]
        %v565 = vld [vmem:[#allocation4 + $0x28] sm:$0xf]
        %v566 = vld [vmem:[%s1] sm:$0xf]
        %v567 = vld [vmem:[%s1 + $0x4] sm:$0xf]
        %v568 = vld [vmem:[%s1 + $0x8] sm:$0xf]
        %v569 = vld [vmem:[%s1 + $0xc] sm:$0xf]
        %v570 = vld [vmem:[%s1 + $0x10] sm:$0x3]
        %v571 = vld [vmem:[%s2] sm:$0x1]
        %v573 = vlaneseq
        %v574 = vshrl.u32 %v573, 7
        %v575 = vsub.s32 0, %v574
        %v576 = vrot.slane %v571, %v575
        %v581 = vunpack.c.l.b16 %v563
        %v582 = vunpack.c.l.b16 %v564
        %v583 = vunpack.c.l.b16 %v565
        %v584 = vpack.c.b16 %v582, %v581
        %v585 = vpack.c.b16 %v583, %v583
        %v591 = vunpack.c.l.b16 %v566
        %v592 = vunpack.c.l.b16 %v567
        %v593 = vunpack.c.l.b16 %v568
        %v594 = vunpack.c.l.b16 %v569
        %v595 = vunpack.c.l.b16 %v570
        %v596 = vpack.c.b16 %v592, %v591
        %v597 = vpack.c.b16 %v594, %v593
        %v598 = vpack.c.b16 %v595, %v595
        %vm601 = vcmask 293888
        %v603 = vsel %vm601, %v584, 0
        %v606 = vsel %vm601, %v585, 0
        %vm608 = vcmask 1041408
        %v610 = vsel %vm608, %v598, 0
        %612 = vmatprep.subr.bf16.mxu0 0
        %613 = vmatpush1.bf16.msra.mxu0 0
        %614 = vmatprep.subr.bf16.mxu0 0
        %615 = vmatpush1.bf16.msra.mxu0 0
        %616 = vmatprep.subr.bf16.mxu0 0
        %617 = vmatpush1.bf16.msra.mxu0 0
        %618 = vmatprep.subr.bf16.mxu0 0
        %619 = vmatpush1.bf16.msra.mxu0 0
        %620 = vmatprep.subr.bf16.mxu0 0
        %621 = vmatpush1.bf16.msra.mxu0 0
        %622 = vmatprep.subr.bf16.mxu0 0
        %623 = vmatpush1.bf16.msra.mxu0 %v610
        %624 = vmatprep.subr.bf16.mxu0 0
        %625 = vmatpush1.bf16.msra.mxu0 %v597
        %626 = vmatprep.subr.bf16.mxu0 0
        %627 = vmatpush1.bf16.msra.mxu0 %v596
        %628 = vmatprep.subr.bf16.mxu0 0
        %629 = vmatpush2.bf16.msra.mxu0 0
        %630 = vmatprep.subr.bf16.mxu0 0
        %631 = vmatpush2.bf16.msra.mxu0 0
        %632 = vmatprep.subr.bf16.mxu0 0
        %633 = vmatpush2.bf16.msra.mxu0 0
        %634 = vmatprep.subr.bf16.mxu0 0
        %635 = vmatpush2.bf16.msra.mxu0 0
        %636 = vmatprep.subr.bf16.mxu0 0
        %637 = vmatpush2.bf16.msra.mxu0 0
        %638 = vmatprep.subr.bf16.mxu0 0
        %639 = vmatpush2.bf16.msra.mxu0 0
        %640 = vmatprep.subr.bf16.mxu0 0
        %641 = vmatpush2.bf16.msra.mxu0 0
        %642 = vmatprep.subr.bf16.mxu0 0
        %643 = vmatpush2.bf16.msra.mxu0 0
        %644 = vmatprep.mubr.bf16.mxu0 0
        %645 = vmatmul.mubr.bf16.gmra.mxu0 %v603
        %v646 = vpop.f32.mrf.mxu0
        %v647 = vadd.f32 %v576, %v646
        %v648 = vpop.f32.mrf.mxu0
        %v649 = vpop.f32.mrf.mxu0
        %v650 = vadd.f32 %v576, %v649
        %v651 = vpop.f32.mrf.mxu0
        %652 = vmatprep.mubr.bf16.mxu0 0
        %653 = vmatmul.mubr.bf16.gmra.mxu0 %v606
        %v654 = vpop.f32.mrf.mxu0
        %v655 = vadd.f32 %v576, %v654
        %v656 = vpop.f32.mrf.mxu0
        %v657 = vpop.f32.mrf.mxu0
        %v658 = vpop.f32.mrf.mxu0
        %659 = vdwg.mxu0
        %v660 = vmax.f32 %v647, 0.0
        %v661 = vmax.f32 %v650, 0.0
        %v662 = vmax.f32 %v655, 0.0
        %664 = vset.pattern.permute.xlu0 0
        %665 = vperm.xlu0 %664, %v332
        %v666 = vpop.permute.xlu0 %665
        %669 = vset.pattern.permute.xlu0 0
        %670 = vperm.xlu0 %669, %v333
        %v671 = vpop.permute.xlu0 %670
        %674 = vset.pattern.permute.xlu0 0
        %675 = vperm.xlu0 %674, %v334
        %v676 = vpop.permute.xlu0 %675
        %v678 = vmul.f32 %v660, %v666
        %v679 = vmul.f32 %v661, %v671
        %v680 = vmul.f32 %v662, %v676
        %vm681 = vcmask 260096
        %682 = vst.msk [vmem:[#allocation2] sm:$0x7f] %vm681, 0.0
        %vm683 = vcmask 261120
        %684 = vst.msk [vmem:[#allocation2 + $0x1f] sm:$0xff] %vm683, 0.0
        %vm685 = vcmask 256000
        %686 = vst.msk [vmem:[#allocation2 + $0x27] sm:$0x7] %vm685, 0.0
        %687 = vst.msk [vmem:[#allocation2 + $0x7] sm:$0xff] %vm683, %v678
        %688 = vst.msk [vmem:[#allocation2 + $0xf] sm:$0xff] %vm683, %v679
        %689 = vst.msk [vmem:[#allocation2 + $0x17] sm:$0xff] %vm683, %v680
        %v690 = vld [vmem:[#allocation2] sm:$0xff]
        %v691 = vld [vmem:[#allocation2 + $0x8] sm:$0xff]
        %v692 = vld [vmem:[#allocation2 + $0x10] sm:$0xff]
        %v693 = vpack.c.bf16 %v691, %v690
        %v694 = vpack.c.bf16 %v692, %v692
        %v697 = vunpack.c.l.b16 %v693
        %v698 = vunpack.c.h.b16 %v693
        %v699 = vunpack.c.l.b16 %v694
        %v700 = vpack.c.b16 %v697, %v697
        %v701 = vpack.c.b16 %v698, %v698
        %v702 = vpack.c.b16 %v699, %v699
        %vm706 = vcmask 257024
        %707 = vst.msk [vmem:[#allocation4] sm:$0xf] %vm706, %v700
        %708 = vst.msk [vmem:[#allocation4 + $0x14] sm:$0xf] %vm706, %v701
        %709 = vst.msk [vmem:[#allocation4 + $0x28] sm:$0xf] %vm706, %v702
        %v710 = vld [vmem:[#allocation2 + $0x1] sm:$0xff]
        %v711 = vld [vmem:[#allocation2 + $0x9] sm:$0xff]
        %v712 = vld [vmem:[#allocation2 + $0x11] sm:$0xff]
        %v713 = vpack.c.bf16 %v711, %v710
        %v714 = vpack.c.bf16 %v712, %v712
        %v717 = vunpack.c.l.b16 %v713
        %v718 = vunpack.c.h.b16 %v713
        %v719 = vunpack.c.l.b16 %v714
        %v720 = vpack.c.b16 %v717, %v717
        %v721 = vpack.c.b16 %v718, %v718
        %v722 = vpack.c.b16 %v719, %v719
        %723 = vrot.lane.b32.xlu0 %v720, 32
        %v724 = vpop.permute.xlu0 %723
        %725 = vrot.lane.b32.xlu0 %v721, 32
        %v726 = vpop.permute.xlu0 %725
        %727 = vrot.lane.b32.xlu0 %v722, 32
        %v728 = vpop.permute.xlu0 %727
        %vm732 = vcmask 519424
        %733 = vst.msk [vmem:[#allocation4] sm:$0xf] %vm732, %v724
        %734 = vst.msk [vmem:[#allocation4 + $0x14] sm:$0xf] %vm732, %v726
        %735 = vst.msk [vmem:[#allocation4 + $0x28] sm:$0xf] %vm732, %v728
        %v736 = vld [vmem:[#allocation2 + $0x2] sm:$0xff]
        %v737 = vld [vmem:[#allocation2 + $0xa] sm:$0xff]
        %v738 = vld [vmem:[#allocation2 + $0x12] sm:$0xff]
        %v739 = vpack.c.bf16 %v737, %v736
        %v740 = vpack.c.bf16 %v738, %v738
        %v743 = vunpack.c.l.b16 %v739
        %v744 = vunpack.c.h.b16 %v739
        %v745 = vunpack.c.l.b16 %v740
        %v746 = vpack.c.b16 %v743, %v743
        %v747 = vpack.c.b16 %v744, %v744
        %v748 = vpack.c.b16 %v745, %v745
        %749 = vrot.lane.b32.xlu0 %v746, 64
        %v750 = vpop.permute.xlu0 %749
        %751 = vrot.lane.b32.xlu0 %v747, 64
        %v752 = vpop.permute.xlu0 %751
        %753 = vrot.lane.b32.xlu0 %v748, 64
        %v754 = vpop.permute.xlu0 %753
        %vm758 = vcmask 781824
        %759 = vst.msk [vmem:[#allocation4] sm:$0xf] %vm758, %v750
        %760 = vst.msk [vmem:[#allocation4 + $0x14] sm:$0xf] %vm758, %v752
        %761 = vst.msk [vmem:[#allocation4 + $0x28] sm:$0xf] %vm758, %v754
        %v762 = vld [vmem:[#allocation2 + $0x6] sm:$0xff]
        %v763 = vld [vmem:[#allocation2 + $0xe] sm:$0xff]
        %v764 = vld [vmem:[#allocation2 + $0x16] sm:$0xff]
        %v765 = vpack.c.bf16 %v763, %v762
        %v766 = vpack.c.bf16 %v764, %v764
        %v769 = vunpack.c.l.b16 %v765
        %v770 = vunpack.c.h.b16 %v765
        %v771 = vunpack.c.l.b16 %v766
        %v772 = vpack.c.b16 %v769, %v769
        %v773 = vpack.c.b16 %v770, %v770
        %v774 = vpack.c.b16 %v771, %v771
        %775 = vrot.lane.b32.xlu0 %v772, 96
        %v776 = vpop.permute.xlu0 %775
        %777 = vrot.lane.b32.xlu0 %v773, 96
        %v778 = vpop.permute.xlu0 %777
        %779 = vrot.lane.b32.xlu0 %v774, 96
        %v780 = vpop.permute.xlu0 %779
        %vm784 = vcmask 1044224
        %785 = vst.msk [vmem:[#allocation4] sm:$0xf] %vm784, %v776
        %786 = vst.msk [vmem:[#allocation4 + $0x14] sm:$0xf] %vm784, %v778
        %787 = vst.msk [vmem:[#allocation4 + $0x28] sm:$0xf] %vm784, %v780
        %v788 = vld [vmem:[#allocation2 + $0x7] sm:$0xff]
        %v789 = vld [vmem:[#allocation2 + $0xf] sm:$0xff]
        %v790 = vld [vmem:[#allocation2 + $0x17] sm:$0xff]
        %v791 = vpack.c.bf16 %v789, %v788
        %v792 = vpack.c.bf16 %v790, %v790
        %v795 = vunpack.c.l.b16 %v791
        %v796 = vunpack.c.h.b16 %v791
        %v797 = vunpack.c.l.b16 %v792
        %v798 = vpack.c.b16 %v795, %v795
        %v799 = vpack.c.b16 %v796, %v796
        %v800 = vpack.c.b16 %v797, %v797
        %804 = vst.msk [vmem:[#allocation4 + $0x4] sm:$0xf] %vm706, %v798
        %805 = vst.msk [vmem:[#allocation4 + $0x18] sm:$0xf] %vm706, %v799
        %806 = vst.msk [vmem:[#allocation4 + $0x2c] sm:$0xf] %vm706, %v800
        %v807 = vld [vmem:[#allocation2 + $0x8] sm:$0xff]
        %v808 = vld [vmem:[#allocation2 + $0x10] sm:$0xff]
        %v809 = vld [vmem:[#allocation2 + $0x18] sm:$0xff]
        %v810 = vpack.c.bf16 %v808, %v807
        %v811 = vpack.c.bf16 %v809, %v809
        %v814 = vunpack.c.l.b16 %v810
        %v815 = vunpack.c.h.b16 %v810
        %v816 = vunpack.c.l.b16 %v811
        %v817 = vpack.c.b16 %v814, %v814
        %v818 = vpack.c.b16 %v815, %v815
        %v819 = vpack.c.b16 %v816, %v816
        %820 = vrot.lane.b32.xlu0 %v817, 32
        %v821 = vpop.permute.xlu0 %820
        %822 = vrot.lane.b32.xlu0 %v818, 32
        %v823 = vpop.permute.xlu0 %822
        %824 = vrot.lane.b32.xlu0 %v819, 32
        %v825 = vpop.permute.xlu0 %824
        %829 = vst.msk [vmem:[#allocation4 + $0x4] sm:$0xf] %vm732, %v821
        %830 = vst.msk [vmem:[#allocation4 + $0x18] sm:$0xf] %vm732, %v823
        %831 = vst.msk [vmem:[#allocation4 + $0x2c] sm:$0xf] %vm732, %v825
        %v832 = vld [vmem:[#allocation2 + $0xc] sm:$0xff]
        %v833 = vld [vmem:[#allocation2 + $0x14] sm:$0xff]
        %v834 = vld [vmem:[#allocation2 + $0x1c] sm:$0xff]
        %v835 = vpack.c.bf16 %v833, %v832
        %v836 = vpack.c.bf16 %v834, %v834
        %v839 = vunpack.c.l.b16 %v835
        %v840 = vunpack.c.h.b16 %v835
        %v841 = vunpack.c.l.b16 %v836
        %v842 = vpack.c.b16 %v839, %v839
        %v843 = vpack.c.b16 %v840, %v840
        %v844 = vpack.c.b16 %v841, %v841
        %845 = vrot.lane.b32.xlu0 %v842, 64
        %v846 = vpop.permute.xlu0 %845
        %847 = vrot.lane.b32.xlu0 %v843, 64
        %v848 = vpop.permute.xlu0 %847
        %849 = vrot.lane.b32.xlu0 %v844, 64
        %v850 = vpop.permute.xlu0 %849
        %854 = vst.msk [vmem:[#allocation4 + $0x4] sm:$0xf] %vm758, %v846
        %855 = vst.msk [vmem:[#allocation4 + $0x18] sm:$0xf] %vm758, %v848
        %856 = vst.msk [vmem:[#allocation4 + $0x2c] sm:$0xf] %vm758, %v850
        %v857 = vld [vmem:[#allocation2 + $0xd] sm:$0xff]
        %v858 = vld [vmem:[#allocation2 + $0x15] sm:$0xff]
        %v859 = vld [vmem:[#allocation2 + $0x1d] sm:$0xff]
        %v860 = vpack.c.bf16 %v858, %v857
        %v861 = vpack.c.bf16 %v859, %v859
        %v864 = vunpack.c.l.b16 %v860
        %v865 = vunpack.c.h.b16 %v860
        %v866 = vunpack.c.l.b16 %v861
        %v867 = vpack.c.b16 %v864, %v864
        %v868 = vpack.c.b16 %v865, %v865
        %v869 = vpack.c.b16 %v866, %v866
        %870 = vrot.lane.b32.xlu0 %v867, 96
        %v871 = vpop.permute.xlu0 %870
        %872 = vrot.lane.b32.xlu0 %v868, 96
        %v873 = vpop.permute.xlu0 %872
        %874 = vrot.lane.b32.xlu0 %v869, 96
        %v875 = vpop.permute.xlu0 %874
        %879 = vst.msk [vmem:[#allocation4 + $0x4] sm:$0xf] %vm784, %v871
        %880 = vst.msk [vmem:[#allocation4 + $0x18] sm:$0xf] %vm784, %v873
        %881 = vst.msk [vmem:[#allocation4 + $0x2c] sm:$0xf] %vm784, %v875
        %v882 = vld [vmem:[#allocation2 + $0xe] sm:$0xff]
        %v883 = vld [vmem:[#allocation2 + $0x16] sm:$0xff]
        %v884 = vld [vmem:[#allocation2 + $0x1e] sm:$0xff]
        %v885 = vpack.c.bf16 %v883, %v882
        %v886 = vpack.c.bf16 %v884, %v884
        %v889 = vunpack.c.l.b16 %v885
        %v890 = vunpack.c.h.b16 %v885
        %v891 = vunpack.c.l.b16 %v886
        %v892 = vpack.c.b16 %v889, %v889
        %v893 = vpack.c.b16 %v890, %v890
        %v894 = vpack.c.b16 %v891, %v891
        %898 = vst.msk [vmem:[#allocation4 + $0x8] sm:$0xf] %vm706, %v892
        %899 = vst.msk [vmem:[#allocation4 + $0x1c] sm:$0xf] %vm706, %v893
        %900 = vst.msk [vmem:[#allocation4 + $0x30] sm:$0xf] %vm706, %v894
        %v901 = vld [vmem:[#allocation4] sm:$0xff]
        %v902 = vld [vmem:[#allocation4 + $0x8] sm:$0xf]
        %v903 = vld [vmem:[#allocation4 + $0x14] sm:$0xff]
        %v904 = vld [vmem:[#allocation4 + $0x1c] sm:$0xf]
        %v905 = vld [vmem:[#allocation4 + $0x28] sm:$0xff]
        %v906 = vld [vmem:[#allocation4 + $0x30] sm:$0xf]
        %v907 = vld [vmem:[%s3] sm:$0xf]
        %v908 = vld [vmem:[%s3 + $0x4] sm:$0xf]
        %v909 = vld [vmem:[%s3 + $0x8] sm:$0xf]
        %v910 = vld [vmem:[%s3 + $0xc] sm:$0xf]
        %v911 = vld [vmem:[%s3 + $0x10] sm:$0xf]
        %v912 = vld [vmem:[%s3 + $0x14] sm:$0xf]
        %v913 = vld [vmem:[%s3 + $0x18] sm:$0xf]
        %v914 = vld [vmem:[%s3 + $0x1c] sm:$0xf]
        %v915 = vld [vmem:[%s3 + $0x20] sm:$0xf]
        %v916 = vld [vmem:[%s3 + $0x24] sm:$0xf]
        %v917 = vld [vmem:[%s3 + $0x28] sm:$0xf]
        %v918 = vld [vmem:[%s3 + $0x2c] sm:$0xf]
        %v919 = vld [vmem:[%s3 + $0x30] sm:$0xf]
        %v920 = vld [vmem:[%s3 + $0x34] sm:$0xf]
        %v921 = vld [vmem:[%s3 + $0x38] sm:$0xf]
        %v922 = vld [vmem:[%s3 + $0x3c] sm:$0xf]
        %v923 = vld [vmem:[%s3 + $0x40] sm:$0xf]
        %v924 = vld [vmem:[%s3 + $0x44] sm:$0xf]
        %v925 = vld [vmem:[%s3 + $0x48] sm:$0xf]
        %v926 = vld [vmem:[%s3 + $0x4c] sm:$0xf]
        %v927 = vld [vmem:[%s3 + $0x50] sm:$0xf]
        %v928 = vld [vmem:[%s3 + $0x54] sm:$0xf]
        %v929 = vld [vmem:[%s3 + $0x58] sm:$0xf]
        %v930 = vld [vmem:[%s3 + $0x5c] sm:$0xf]
        %v931 = vld [vmem:[%s3 + $0x60] sm:$0xf]
        %v932 = vld [vmem:[%s3 + $0x64] sm:$0xf]
        %v933 = vld [vmem:[%s3 + $0x68] sm:$0xf]
        %v934 = vld [vmem:[%s3 + $0x6c] sm:$0xf]
        %v935 = vld [vmem:[%s3 + $0x70] sm:$0xf]
        %v936 = vld [vmem:[%s3 + $0x74] sm:$0xf]
        %v937 = vld [vmem:[%s3 + $0x78] sm:$0xf]
        %v938 = vld [vmem:[%s3 + $0x7c] sm:$0xf]
        %v939 = vld [vmem:[%s3 + $0x80] sm:$0xf]
        %v940 = vld [vmem:[%s3 + $0x84] sm:$0xf]
        %v941 = vld [vmem:[%s3 + $0x88] sm:$0xf]
        %v942 = vld [vmem:[%s3 + $0x8c] sm:$0xf]
        %v943 = vld [vmem:[%s4] sm:$0x1]
        %v945 = vlaneseq
        %v946 = vshrl.u32 %v945, 7
        %v947 = vsub.s32 0, %v946
        %v948 = vrot.slane %v943, %v947
        %v956 = vunpack.c.l.b16 %v901
        %v957 = vunpack.c.h.b16 %v901
        %v958 = vunpack.c.l.b16 %v902
        %v959 = vunpack.c.l.b16 %v903
        %v960 = vunpack.c.h.b16 %v903
        %v961 = vunpack.c.l.b16 %v904
        %v962 = vunpack.c.l.b16 %v905
        %v963 = vunpack.c.h.b16 %v905
        %v964 = vunpack.c.l.b16 %v906
        %v965 = vpack.c.b16 %v959, %v956
        %v966 = vpack.c.b16 %v960, %v957
        %v967 = vpack.c.b16 %v961, %v958
        %v968 = vpack.c.b16 %v962, %v962
        %v969 = vpack.c.b16 %v963, %v963
        %v970 = vpack.c.b16 %v964, %v964
        %v1011 = vunpack.c.l.b16 %v907
        %v1012 = vunpack.c.l.b16 %v908
        %v1013 = vunpack.c.l.b16 %v909
        %v1014 = vunpack.c.l.b16 %v910
        %v1015 = vunpack.c.l.b16 %v911
        %v1016 = vunpack.c.l.b16 %v912
        %v1017 = vunpack.c.l.b16 %v913
        %v1018 = vunpack.c.l.b16 %v914
        %v1019 = vunpack.c.l.b16 %v915
        %v1020 = vunpack.c.l.b16 %v916
        %v1021 = vunpack.c.l.b16 %v917
        %v1022 = vunpack.c.l.b16 %v918
        %v1023 = vunpack.c.l.b16 %v919
        %v1024 = vunpack.c.l.b16 %v920
        %v1025 = vunpack.c.l.b16 %v921
        %v1026 = vunpack.c.l.b16 %v922
        %v1027 = vunpack.c.l.b16 %v923
        %v1028 = vunpack.c.l.b16 %v924
        %v1029 = vunpack.c.l.b16 %v925
        %v1030 = vunpack.c.l.b16 %v926
        %v1031 = vunpack.c.l.b16 %v927
        %v1032 = vunpack.c.l.b16 %v928
        %v1033 = vunpack.c.l.b16 %v929
        %v1034 = vunpack.c.l.b16 %v930
        %v1035 = vunpack.c.l.b16 %v931
        %v1036 = vunpack.c.l.b16 %v932
        %v1037 = vunpack.c.l.b16 %v933
        %v1038 = vunpack.c.l.b16 %v934
        %v1039 = vunpack.c.l.b16 %v935
        %v1040 = vunpack.c.l.b16 %v936
        %v1041 = vunpack.c.l.b16 %v937
        %v1042 = vunpack.c.l.b16 %v938
        %v1043 = vunpack.c.l.b16 %v939
        %v1044 = vunpack.c.l.b16 %v940
        %v1045 = vunpack.c.l.b16 %v941
        %v1046 = vunpack.c.l.b16 %v942
        %v1047 = vpack.c.b16 %v1012, %v1011
        %v1048 = vpack.c.b16 %v1014, %v1013
        %v1049 = vpack.c.b16 %v1016, %v1015
        %v1050 = vpack.c.b16 %v1018, %v1017
        %v1051 = vpack.c.b16 %v1020, %v1019
        %v1052 = vpack.c.b16 %v1022, %v1021
        %v1053 = vpack.c.b16 %v1024, %v1023
        %v1054 = vpack.c.b16 %v1026, %v1025
        %v1055 = vpack.c.b16 %v1028, %v1027
        %v1056 = vpack.c.b16 %v1030, %v1029
        %v1057 = vpack.c.b16 %v1032, %v1031
        %v1058 = vpack.c.b16 %v1034, %v1033
        %v1059 = vpack.c.b16 %v1036, %v1035
        %v1060 = vpack.c.b16 %v1038, %v1037
        %v1061 = vpack.c.b16 %v1040, %v1039
        %v1062 = vpack.c.b16 %v1042, %v1041
        %v1063 = vpack.c.b16 %v1044, %v1043
        %v1064 = vpack.c.b16 %v1046, %v1045
        %v1084 = vsel %vm683, %v967, 0
        %v1087 = vsel %vm683, %v970, 0
        %1089 = vmatprep.subr.bf16.mxu0 0
        %1090 = vmatpush1.bf16.msra.mxu0 %v1054
        %1091 = vmatprep.subr.bf16.mxu0 0
        %1092 = vmatpush1.bf16.msra.mxu0 %v1053
        %1093 = vmatprep.subr.bf16.mxu0 0
        %1094 = vmatpush1.bf16.msra.mxu0 %v1052
        %1095 = vmatprep.subr.bf16.mxu0 0
        %1096 = vmatpush1.bf16.msra.mxu0 %v1051
        %1097 = vmatprep.subr.bf16.mxu0 0
        %1098 = vmatpush1.bf16.msra.mxu0 %v1050
        %1099 = vmatprep.subr.bf16.mxu0 0
        %1100 = vmatpush1.bf16.msra.mxu0 %v1049
        %1101 = vmatprep.subr.bf16.mxu0 0
        %1102 = vmatpush1.bf16.msra.mxu0 %v1048
        %1103 = vmatprep.subr.bf16.mxu0 0
        %1104 = vmatpush1.bf16.msra.mxu0 %v1047
        %1105 = vmatprep.subr.bf16.mxu0 0
        %1106 = vmatpush2.bf16.msra.mxu0 %v1062
        %1107 = vmatprep.subr.bf16.mxu0 0
        %1108 = vmatpush2.bf16.msra.mxu0 %v1061
        %1109 = vmatprep.subr.bf16.mxu0 0
        %1110 = vmatpush2.bf16.msra.mxu0 %v1060
        %1111 = vmatprep.subr.bf16.mxu0 0
        %1112 = vmatpush2.bf16.msra.mxu0 %v1059
        %1113 = vmatprep.subr.bf16.mxu0 0
        %1114 = vmatpush2.bf16.msra.mxu0 %v1058
        %1115 = vmatprep.subr.bf16.mxu0 0
        %1116 = vmatpush2.bf16.msra.mxu0 %v1057
        %1117 = vmatprep.subr.bf16.mxu0 0
        %1118 = vmatpush2.bf16.msra.mxu0 %v1056
        %1119 = vmatprep.subr.bf16.mxu0 0
        %1120 = vmatpush2.bf16.msra.mxu0 %v1055
        %1121 = vmatprep.mubr.bf16.mxu0 %v966
        %1122 = vmatmul.mubr.bf16.gmra.mxu0 %v965
        %v1123 = vpop.f32.mrf.mxu0
        %v1124 = vadd.f32 %v948, %v1123
        %v1125 = vpop.f32.mrf.mxu0
        %v1126 = vpop.f32.mrf.mxu0
        %v1127 = vadd.f32 %v948, %v1126
        %v1128 = vpop.f32.mrf.mxu0
        %1129 = vmatprep.mubr.bf16.mxu0 %v969
        %1130 = vmatmul.mubr.bf16.gmra.mxu0 %v968
        %v1131 = vpop.f32.mrf.mxu0
        %v1132 = vadd.f32 %v948, %v1131
        %v1133 = vpop.f32.mrf.mxu0
        %v1134 = vpop.f32.mrf.mxu0
        %v1135 = vpop.f32.mrf.mxu0
        %1136 = vdwg.mxu0
        %1137 = vmatprep.subr.bf16.mxu0 0
        %1138 = vmatpush1.bf16.msra.mxu0 0
        %1139 = vmatprep.subr.bf16.mxu0 0
        %1140 = vmatpush1.bf16.msra.mxu0 0
        %1141 = vmatprep.subr.bf16.mxu0 0
        %1142 = vmatpush1.bf16.msra.mxu0 0
        %1143 = vmatprep.subr.bf16.mxu0 0
        %1144 = vmatpush1.bf16.msra.mxu0 0
        %1145 = vmatprep.subr.bf16.mxu0 0
        %1146 = vmatpush1.bf16.msra.mxu0 0
        %1147 = vmatprep.subr.bf16.mxu0 0
        %1148 = vmatpush1.bf16.msra.mxu0 0
        %1149 = vmatprep.subr.bf16.mxu0 0
        %1150 = vmatpush1.bf16.msra.mxu0 %v1064
        %1151 = vmatprep.subr.bf16.mxu0 0
        %1152 = vmatpush1.bf16.msra.mxu0 %v1063
        %1153 = vmatprep.subr.bf16.mxu0 0
        %1154 = vmatpush2.bf16.msra.mxu0 0
        %1155 = vmatprep.subr.bf16.mxu0 0
        %1156 = vmatpush2.bf16.msra.mxu0 0
        %1157 = vmatprep.subr.bf16.mxu0 0
        %1158 = vmatpush2.bf16.msra.mxu0 0
        %1159 = vmatprep.subr.bf16.mxu0 0
        %1160 = vmatpush2.bf16.msra.mxu0 0
        %1161 = vmatprep.subr.bf16.mxu0 0
        %1162 = vmatpush2.bf16.msra.mxu0 0
        %1163 = vmatprep.subr.bf16.mxu0 0
        %1164 = vmatpush2.bf16.msra.mxu0 0
        %1165 = vmatprep.subr.bf16.mxu0 0
        %1166 = vmatpush2.bf16.msra.mxu0 0
        %1167 = vmatprep.subr.bf16.mxu0 0
        %1168 = vmatpush2.bf16.msra.mxu0 0
        %1169 = vmatprep.mubr.bf16.mxu0 0
        %1170 = vmatmul.mubr.bf16.gmra.mxu0 %v1084
        %v1171 = vpop.f32.mrf.mxu0
        %v1172 = vadd.f32 %v1124, %v1171
        %v1173 = vpop.f32.mrf.mxu0
        %v1174 = vpop.f32.mrf.mxu0
        %v1175 = vadd.f32 %v1127, %v1174
        %v1176 = vpop.f32.mrf.mxu0
        %1177 = vmatprep.mubr.bf16.mxu0 0
        %1178 = vmatmul.mubr.bf16.gmra.mxu0 %v1087
        %v1179 = vpop.f32.mrf.mxu0
        %v1180 = vadd.f32 %v1132, %v1179
        %v1181 = vpop.f32.mrf.mxu0
        %v1182 = vpop.f32.mrf.mxu0
        %v1183 = vpop.f32.mrf.mxu0
        %1184 = vdwg.mxu0
        %v1185 = vmax.f32 %v1172, 0.0
        %v1186 = vmax.f32 %v1175, 0.0
        %v1187 = vmax.f32 %v1180, 0.0
        %v1188 = vmul.f32 %v1185, %v666
        %v1189 = vmul.f32 %v1186, %v671
        %v1190 = vmul.f32 %v1187, %v676
        %vm1191 = vcmask 522240
        %1192 = vst.msk [vmem:[#allocation3] sm:$0x7f] %vm1191, 0.0
        %vm1193 = vcmask 523264
        %1194 = vst.msk [vmem:[#allocation3 + $0x1f] sm:$0xff] %vm1193, 0.0
        %vm1195 = vcmask 518144
        %1196 = vst.msk [vmem:[#allocation3 + $0x27] sm:$0x7] %vm1195, 0.0
        %1197 = vst.msk [vmem:[#allocation3 + $0x7] sm:$0xff] %vm1193, %v1188
        %1198 = vst.msk [vmem:[#allocation3 + $0xf] sm:$0xff] %vm1193, %v1189
        %1199 = vst.msk [vmem:[#allocation3 + $0x17] sm:$0xff] %vm1193, %v1190
        %v1200 = vld [vmem:[#allocation3] sm:$0xff]
        %v1201 = vld [vmem:[#allocation3 + $0x8] sm:$0xff]
        %v1202 = vld [vmem:[#allocation3 + $0x10] sm:$0xff]
        %v1203 = vpack.c.bf16 %v1201, %v1200
        %v1204 = vpack.c.bf16 %v1202, %v1202
        %v1207 = vunpack.c.l.b16 %v1203
        %v1208 = vunpack.c.h.b16 %v1203
        %v1209 = vunpack.c.l.b16 %v1204
        %v1210 = vpack.c.b16 %v1207, %v1207
        %v1211 = vpack.c.b16 %v1208, %v1208
        %v1212 = vpack.c.b16 %v1209, %v1209
        %vm1216 = vcmask 519168
        %1217 = vst.msk [vmem:[#allocation4] sm:$0xf] %vm1216, %v1210
        %1218 = vst.msk [vmem:[#allocation4 + $0x14] sm:$0xf] %vm1216, %v1211
        %1219 = vst.msk [vmem:[#allocation4 + $0x28] sm:$0xf] %vm1216, %v1212
        %v1220 = vld [vmem:[#allocation3 + $0x1] sm:$0xff]
        %v1221 = vld [vmem:[#allocation3 + $0x9] sm:$0xff]
        %v1222 = vld [vmem:[#allocation3 + $0x11] sm:$0xff]
        %v1223 = vpack.c.bf16 %v1221, %v1220
        %v1224 = vpack.c.bf16 %v1222, %v1222
        %v1227 = vunpack.c.l.b16 %v1223
        %v1228 = vunpack.c.h.b16 %v1223
        %v1229 = vunpack.c.l.b16 %v1224
        %v1230 = vpack.c.b16 %v1227, %v1227
        %v1231 = vpack.c.b16 %v1228, %v1228
        %v1232 = vpack.c.b16 %v1229, %v1229
        %1233 = vrot.lane.b32.xlu0 %v1230, 64
        %v1234 = vpop.permute.xlu0 %1233
        %1235 = vrot.lane.b32.xlu0 %v1231, 64
        %v1236 = vpop.permute.xlu0 %1235
        %1237 = vrot.lane.b32.xlu0 %v1232, 64
        %v1238 = vpop.permute.xlu0 %1237
        %vm1242 = vcmask 1043968
        %1243 = vst.msk [vmem:[#allocation4] sm:$0xf] %vm1242, %v1234
        %1244 = vst.msk [vmem:[#allocation4 + $0x14] sm:$0xf] %vm1242, %v1236
        %1245 = vst.msk [vmem:[#allocation4 + $0x28] sm:$0xf] %vm1242, %v1238
        %v1246 = vld [vmem:[#allocation3 + $0x2] sm:$0xff]
        %v1247 = vld [vmem:[#allocation3 + $0xa] sm:$0xff]
        %v1248 = vld [vmem:[#allocation3 + $0x12] sm:$0xff]
        %v1249 = vpack.c.bf16 %v1247, %v1246
        %v1250 = vpack.c.bf16 %v1248, %v1248
        %v1253 = vunpack.c.l.b16 %v1249
        %v1254 = vunpack.c.h.b16 %v1249
        %v1255 = vunpack.c.l.b16 %v1250
        %v1256 = vpack.c.b16 %v1253, %v1253
        %v1257 = vpack.c.b16 %v1254, %v1254
        %v1258 = vpack.c.b16 %v1255, %v1255
        %1262 = vst.msk [vmem:[#allocation4 + $0x4] sm:$0xf] %vm1216, %v1256
        %1263 = vst.msk [vmem:[#allocation4 + $0x18] sm:$0xf] %vm1216, %v1257
        %1264 = vst.msk [vmem:[#allocation4 + $0x2c] sm:$0xf] %vm1216, %v1258
        %v1265 = vld [vmem:[#allocation3 + $0x6] sm:$0xff]
        %v1266 = vld [vmem:[#allocation3 + $0xe] sm:$0xff]
        %v1267 = vld [vmem:[#allocation3 + $0x16] sm:$0xff]
        %v1268 = vpack.c.bf16 %v1266, %v1265
        %v1269 = vpack.c.bf16 %v1267, %v1267
        %v1272 = vunpack.c.l.b16 %v1268
        %v1273 = vunpack.c.h.b16 %v1268
        %v1274 = vunpack.c.l.b16 %v1269
        %v1275 = vpack.c.b16 %v1272, %v1272
        %v1276 = vpack.c.b16 %v1273, %v1273
        %v1277 = vpack.c.b16 %v1274, %v1274
        %1278 = vrot.lane.b32.xlu0 %v1275, 64
        %v1279 = vpop.permute.xlu0 %1278
        %1280 = vrot.lane.b32.xlu0 %v1276, 64
        %v1281 = vpop.permute.xlu0 %1280
        %1282 = vrot.lane.b32.xlu0 %v1277, 64
        %v1283 = vpop.permute.xlu0 %1282
        %1287 = vst.msk [vmem:[#allocation4 + $0x4] sm:$0xf] %vm1242, %v1279
        %1288 = vst.msk [vmem:[#allocation4 + $0x18] sm:$0xf] %vm1242, %v1281
        %1289 = vst.msk [vmem:[#allocation4 + $0x2c] sm:$0xf] %vm1242, %v1283
        %v1290 = vld [vmem:[#allocation3 + $0x7] sm:$0xff]
        %v1291 = vld [vmem:[#allocation3 + $0xf] sm:$0xff]
        %v1292 = vld [vmem:[#allocation3 + $0x17] sm:$0xff]
        %v1293 = vpack.c.bf16 %v1291, %v1290
        %v1294 = vpack.c.bf16 %v1292, %v1292
        %v1297 = vunpack.c.l.b16 %v1293
        %v1298 = vunpack.c.h.b16 %v1293
        %v1299 = vunpack.c.l.b16 %v1294
        %v1300 = vpack.c.b16 %v1297, %v1297
        %v1301 = vpack.c.b16 %v1298, %v1298
        %v1302 = vpack.c.b16 %v1299, %v1299
        %1306 = vst.msk [vmem:[#allocation4 + $0x8] sm:$0xf] %vm1216, %v1300
        %1307 = vst.msk [vmem:[#allocation4 + $0x1c] sm:$0xf] %vm1216, %v1301
        %1308 = vst.msk [vmem:[#allocation4 + $0x30] sm:$0xf] %vm1216, %v1302
        %v1309 = vld [vmem:[#allocation3 + $0x8] sm:$0xff]
        %v1310 = vld [vmem:[#allocation3 + $0x10] sm:$0xff]
        %v1311 = vld [vmem:[#allocation3 + $0x18] sm:$0xff]
        %v1312 = vpack.c.bf16 %v1310, %v1309
        %v1313 = vpack.c.bf16 %v1311, %v1311
        %v1316 = vunpack.c.l.b16 %v1312
        %v1317 = vunpack.c.h.b16 %v1312
        %v1318 = vunpack.c.l.b16 %v1313
        %v1319 = vpack.c.b16 %v1316, %v1316
        %v1320 = vpack.c.b16 %v1317, %v1317
        %v1321 = vpack.c.b16 %v1318, %v1318
        %1322 = vrot.lane.b32.xlu0 %v1319, 64
        %v1323 = vpop.permute.xlu0 %1322
        %1324 = vrot.lane.b32.xlu0 %v1320, 64
        %v1325 = vpop.permute.xlu0 %1324
        %1326 = vrot.lane.b32.xlu0 %v1321, 64
        %v1327 = vpop.permute.xlu0 %1326
        %1331 = vst.msk [vmem:[#allocation4 + $0x8] sm:$0xf] %vm1242, %v1323
        %1332 = vst.msk [vmem:[#allocation4 + $0x1c] sm:$0xf] %vm1242, %v1325
        %1333 = vst.msk [vmem:[#allocation4 + $0x30] sm:$0xf] %vm1242, %v1327
        %v1334 = vld [vmem:[#allocation3 + $0xc] sm:$0xff]
        %v1335 = vld [vmem:[#allocation3 + $0x14] sm:$0xff]
        %v1336 = vld [vmem:[#allocation3 + $0x1c] sm:$0xff]
        %v1337 = vpack.c.bf16 %v1335, %v1334
        %v1338 = vpack.c.bf16 %v1336, %v1336
        %v1341 = vunpack.c.l.b16 %v1337
        %v1342 = vunpack.c.h.b16 %v1337
        %v1343 = vunpack.c.l.b16 %v1338
        %v1344 = vpack.c.b16 %v1341, %v1341
        %v1345 = vpack.c.b16 %v1342, %v1342
        %v1346 = vpack.c.b16 %v1343, %v1343
        %1350 = vst.msk [vmem:[#allocation4 + $0xc] sm:$0xf] %vm1216, %v1344
        %1351 = vst.msk [vmem:[#allocation4 + $0x20] sm:$0xf] %vm1216, %v1345
        %1352 = vst.msk [vmem:[#allocation4 + $0x34] sm:$0xf] %vm1216, %v1346
        %v1353 = vld [vmem:[#allocation3 + $0xd] sm:$0xff]
        %v1354 = vld [vmem:[#allocation3 + $0x15] sm:$0xff]
        %v1355 = vld [vmem:[#allocation3 + $0x1d] sm:$0xff]
        %v1356 = vpack.c.bf16 %v1354, %v1353
        %v1357 = vpack.c.bf16 %v1355, %v1355
        %v1360 = vunpack.c.l.b16 %v1356
        %v1361 = vunpack.c.h.b16 %v1356
        %v1362 = vunpack.c.l.b16 %v1357
        %v1363 = vpack.c.b16 %v1360, %v1360
        %v1364 = vpack.c.b16 %v1361, %v1361
        %v1365 = vpack.c.b16 %v1362, %v1362
        %1366 = vrot.lane.b32.xlu0 %v1363, 64
        %v1367 = vpop.permute.xlu0 %1366
        %1368 = vrot.lane.b32.xlu0 %v1364, 64
        %v1369 = vpop.permute.xlu0 %1368
        %1370 = vrot.lane.b32.xlu0 %v1365, 64
        %v1371 = vpop.permute.xlu0 %1370
        %1375 = vst.msk [vmem:[#allocation4 + $0xc] sm:$0xf] %vm1242, %v1367
        %1376 = vst.msk [vmem:[#allocation4 + $0x20] sm:$0xf] %vm1242, %v1369
        %1377 = vst.msk [vmem:[#allocation4 + $0x34] sm:$0xf] %vm1242, %v1371
        %v1378 = vld [vmem:[#allocation3 + $0xe] sm:$0xff]
        %v1379 = vld [vmem:[#allocation3 + $0x16] sm:$0xff]
        %v1380 = vld [vmem:[#allocation3 + $0x1e] sm:$0xff]
        %v1381 = vpack.c.bf16 %v1379, %v1378
        %v1382 = vpack.c.bf16 %v1380, %v1380
        %v1385 = vunpack.c.l.b16 %v1381
        %v1386 = vunpack.c.h.b16 %v1381
        %v1387 = vunpack.c.l.b16 %v1382
        %v1388 = vpack.c.b16 %v1385, %v1385
        %v1389 = vpack.c.b16 %v1386, %v1386
        %v1390 = vpack.c.b16 %v1387, %v1387
        %1394 = vst.msk [vmem:[#allocation4 + $0x10] sm:$0xf] %vm1216, %v1388
        %1395 = vst.msk [vmem:[#allocation4 + $0x24] sm:$0xf] %vm1216, %v1389
        %1396 = vst.msk [vmem:[#allocation4 + $0x38] sm:$0xf] %vm1216, %v1390
        %v1397 = vld [vmem:[#allocation4] sm:$0xff]
        %v1398 = vld [vmem:[#allocation4 + $0x8] sm:$0xff]
        %v1399 = vld [vmem:[#allocation4 + $0x10] sm:$0xf]
        %v1400 = vld [vmem:[#allocation4 + $0x14] sm:$0xff]
        %v1401 = vld [vmem:[#allocation4 + $0x1c] sm:$0xff]
        %v1402 = vld [vmem:[#allocation4 + $0x24] sm:$0xf]
        %v1403 = vld [vmem:[#allocation4 + $0x28] sm:$0xff]
        %v1404 = vld [vmem:[#allocation4 + $0x30] sm:$0xff]
        %v1405 = vld [vmem:[#allocation4 + $0x38] sm:$0xf]
        %v1406 = vld [vmem:[%s5] sm:$0xf]
        %v1407 = vld [vmem:[%s5 + $0x4] sm:$0xf]
        %v1408 = vld [vmem:[%s5 + $0x8] sm:$0xf]
        %v1409 = vld [vmem:[%s5 + $0xc] sm:$0xf]
        %v1410 = vld [vmem:[%s5 + $0x10] sm:$0xf]
        %v1411 = vld [vmem:[%s5 + $0x14] sm:$0xf]
        %v1412 = vld [vmem:[%s5 + $0x18] sm:$0xf]
        %v1413 = vld [vmem:[%s5 + $0x1c] sm:$0xf]
        %v1414 = vld [vmem:[%s5 + $0x20] sm:$0xf]
        %v1415 = vld [vmem:[%s5 + $0x24] sm:$0xf]
        %v1416 = vld [vmem:[%s5 + $0x28] sm:$0xf]
        %v1417 = vld [vmem:[%s5 + $0x2c] sm:$0xf]
        %v1418 = vld [vmem:[%s5 + $0x30] sm:$0xf]
        %v1419 = vld [vmem:[%s5 + $0x34] sm:$0xf]
        %v1420 = vld [vmem:[%s5 + $0x38] sm:$0xf]
        %v1421 = vld [vmem:[%s5 + $0x3c] sm:$0xf]
        %v1422 = vld [vmem:[%s5 + $0x40] sm:$0xf]
        %v1423 = vld [vmem:[%s5 + $0x44] sm:$0xf]
        %v1424 = vld [vmem:[%s5 + $0x48] sm:$0xf]
        %v1425 = vld [vmem:[%s5 + $0x4c] sm:$0xf]
        %v1426 = vld [vmem:[%s5 + $0x50] sm:$0xf]
        %v1427 = vld [vmem:[%s5 + $0x54] sm:$0xf]
        %v1428 = vld [vmem:[%s5 + $0x58] sm:$0xf]
        %v1429 = vld [vmem:[%s5 + $0x5c] sm:$0xf]
        %v1430 = vld [vmem:[%s5 + $0x60] sm:$0xf]
        %v1431 = vld [vmem:[%s5 + $0x64] sm:$0xf]
        %v1432 = vld [vmem:[%s5 + $0x68] sm:$0xf]
        %v1433 = vld [vmem:[%s5 + $0x6c] sm:$0xf]
        %v1434 = vld [vmem:[%s5 + $0x70] sm:$0xf]
        %v1435 = vld [vmem:[%s5 + $0x74] sm:$0xf]
        %v1436 = vld [vmem:[%s5 + $0x78] sm:$0xf]
        %v1437 = vld [vmem:[%s5 + $0x7c] sm:$0xf]
        %v1438 = vld [vmem:[%s5 + $0x80] sm:$0xf]
        %v1439 = vld [vmem:[%s5 + $0x84] sm:$0xf]
        %v1440 = vld [vmem:[%s5 + $0x88] sm:$0xf]
        %v1441 = vld [vmem:[%s5 + $0x8c] sm:$0xf]
        %v1442 = vld [vmem:[%s5 + $0x90] sm:$0xf]
        %v1443 = vld [vmem:[%s5 + $0x94] sm:$0xf]
        %v1444 = vld [vmem:[%s5 + $0x98] sm:$0xf]
        %v1445 = vld [vmem:[%s5 + $0x9c] sm:$0xf]
        %v1446 = vld [vmem:[%s5 + $0xa0] sm:$0xf]
        %v1447 = vld [vmem:[%s5 + $0xa4] sm:$0xf]
        %v1448 = vld [vmem:[%s5 + $0xa8] sm:$0xf]
        %v1449 = vld [vmem:[%s5 + $0xac] sm:$0xf]
        %v1450 = vld [vmem:[%s5 + $0xb0] sm:$0xf]
        %v1451 = vld [vmem:[%s5 + $0xb4] sm:$0xf]
        %v1452 = vld [vmem:[%s5 + $0xb8] sm:$0xf]
        %v1453 = vld [vmem:[%s5 + $0xbc] sm:$0xf]
        %v1454 = vld [vmem:[%s5 + $0xc0] sm:$0xf]
        %v1455 = vld [vmem:[%s5 + $0xc4] sm:$0xf]
        %v1456 = vld [vmem:[%s5 + $0xc8] sm:$0xf]
        %v1457 = vld [vmem:[%s5 + $0xcc] sm:$0xf]
        %v1458 = vld [vmem:[%s5 + $0xd0] sm:$0xf]
        %v1459 = vld [vmem:[%s5 + $0xd4] sm:$0xf]
        %v1460 = vld [vmem:[%s5 + $0xd8] sm:$0xf]
        %v1461 = vld [vmem:[%s5 + $0xdc] sm:$0xf]
        %v1462 = vld [vmem:[%s5 + $0xe0] sm:$0xf]
        %v1463 = vld [vmem:[%s5 + $0xe4] sm:$0xf]
        %v1464 = vld [vmem:[%s5 + $0xe8] sm:$0xf]
        %v1465 = vld [vmem:[%s5 + $0xec] sm:$0xf]
        %v1466 = vld [vmem:[%s5 + $0xf0] sm:$0xf]
        %v1467 = vld [vmem:[%s5 + $0xf4] sm:$0xf]
        %v1468 = vld [vmem:[%s5 + $0xf8] sm:$0xf]
        %v1469 = vld [vmem:[%s5 + $0xfc] sm:$0xf]
        %v1470 = vld [vmem:[%s5 + $0x100] sm:$0xf]
        %v1471 = vld [vmem:[%s5 + $0x104] sm:$0xf]
        %v1472 = vld [vmem:[%s5 + $0x108] sm:$0xf]
        %v1473 = vld [vmem:[%s5 + $0x10c] sm:$0xf]
        %v1474 = vld [vmem:[%s5 + $0x110] sm:$0xf]
        %v1475 = vld [vmem:[%s5 + $0x114] sm:$0xf]
        %v1476 = vld [vmem:[%s5 + $0x118] sm:$0xf]
        %v1477 = vld [vmem:[%s5 + $0x11c] sm:$0xf]
        %v1478 = vld [vmem:[%s6] sm:$0x1]
        %v1480 = vlaneseq
        %v1481 = vshrl.u32 %v1480, 7
        %v1482 = vsub.s32 0, %v1481
        %v1483 = vrot.slane %v1478, %v1482
        %v1494 = vunpack.c.l.b16 %v1397
        %v1495 = vunpack.c.h.b16 %v1397
        %v1496 = vunpack.c.l.b16 %v1398
        %v1497 = vunpack.c.h.b16 %v1398
        %v1498 = vunpack.c.l.b16 %v1399
        %v1499 = vunpack.c.l.b16 %v1400
        %v1500 = vunpack.c.h.b16 %v1400
        %v1501 = vunpack.c.l.b16 %v1401
        %v1502 = vunpack.c.h.b16 %v1401
        %v1503 = vunpack.c.l.b16 %v1402
        %v1504 = vunpack.c.l.b16 %v1403
        %v1505 = vunpack.c.h.b16 %v1403
        %v1506 = vunpack.c.l.b16 %v1404
        %v1507 = vunpack.c.h.b16 %v1404
        %v1508 = vunpack.c.l.b16 %v1405
        %v1509 = vpack.c.b16 %v1499, %v1494
        %v1510 = vpack.c.b16 %v1500, %v1495
        %v1511 = vpack.c.b16 %v1501, %v1496
        %v1512 = vpack.c.b16 %v1502, %v1497
        %v1513 = vpack.c.b16 %v1503, %v1498
        %v1514 = vpack.c.b16 %v1504, %v1504
        %v1515 = vpack.c.b16 %v1505, %v1505
        %v1516 = vpack.c.b16 %v1506, %v1506
        %v1517 = vpack.c.b16 %v1507, %v1507
        %v1518 = vpack.c.b16 %v1508, %v1508
        %v1599 = vunpack.c.l.b16 %v1406
        %v1600 = vunpack.c.l.b16 %v1407
        %v1601 = vunpack.c.l.b16 %v1408
        %v1602 = vunpack.c.l.b16 %v1409
        %v1603 = vunpack.c.l.b16 %v1410
        %v1604 = vunpack.c.l.b16 %v1411
        %v1605 = vunpack.c.l.b16 %v1412
        %v1606 = vunpack.c.l.b16 %v1413
        %v1607 = vunpack.c.l.b16 %v1414
        %v1608 = vunpack.c.l.b16 %v1415
        %v1609 = vunpack.c.l.b16 %v1416
        %v1610 = vunpack.c.l.b16 %v1417
        %v1611 = vunpack.c.l.b16 %v1418
        %v1612 = vunpack.c.l.b16 %v1419
        %v1613 = vunpack.c.l.b16 %v1420
        %v1614 = vunpack.c.l.b16 %v1421
        %v1615 = vunpack.c.l.b16 %v1422
        %v1616 = vunpack.c.l.b16 %v1423
        %v1617 = vunpack.c.l.b16 %v1424
        %v1618 = vunpack.c.l.b16 %v1425
        %v1619 = vunpack.c.l.b16 %v1426
        %v1620 = vunpack.c.l.b16 %v1427
        %v1621 = vunpack.c.l.b16 %v1428
        %v1622 = vunpack.c.l.b16 %v1429
        %v1623 = vunpack.c.l.b16 %v1430
        %v1624 = vunpack.c.l.b16 %v1431
        %v1625 = vunpack.c.l.b16 %v1432
        %v1626 = vunpack.c.l.b16 %v1433
        %v1627 = vunpack.c.l.b16 %v1434
        %v1628 = vunpack.c.l.b16 %v1435
        %v1629 = vunpack.c.l.b16 %v1436
        %v1630 = vunpack.c.l.b16 %v1437
        %v1631 = vunpack.c.l.b16 %v1438
        %v1632 = vunpack.c.l.b16 %v1439
        %v1633 = vunpack.c.l.b16 %v1440
        %v1634 = vunpack.c.l.b16 %v1441
        %v1635 = vunpack.c.l.b16 %v1442
        %v1636 = vunpack.c.l.b16 %v1443
        %v1637 = vunpack.c.l.b16 %v1444
        %v1638 = vunpack.c.l.b16 %v1445
        %v1639 = vunpack.c.l.b16 %v1446
        %v1640 = vunpack.c.l.b16 %v1447
        %v1641 = vunpack.c.l.b16 %v1448
        %v1642 = vunpack.c.l.b16 %v1449
        %v1643 = vunpack.c.l.b16 %v1450
        %v1644 = vunpack.c.l.b16 %v1451
        %v1645 = vunpack.c.l.b16 %v1452
        %v1646 = vunpack.c.l.b16 %v1453
        %v1647 = vunpack.c.l.b16 %v1454
        %v1648 = vunpack.c.l.b16 %v1455
        %v1649 = vunpack.c.l.b16 %v1456
        %v1650 = vunpack.c.l.b16 %v1457
        %v1651 = vunpack.c.l.b16 %v1458
        %v1652 = vunpack.c.l.b16 %v1459
        %v1653 = vunpack.c.l.b16 %v1460
        %v1654 = vunpack.c.l.b16 %v1461
        %v1655 = vunpack.c.l.b16 %v1462
        %v1656 = vunpack.c.l.b16 %v1463
        %v1657 = vunpack.c.l.b16 %v1464
        %v1658 = vunpack.c.l.b16 %v1465
        %v1659 = vunpack.c.l.b16 %v1466
        %v1660 = vunpack.c.l.b16 %v1467
        %v1661 = vunpack.c.l.b16 %v1468
        %v1662 = vunpack.c.l.b16 %v1469
        %v1663 = vunpack.c.l.b16 %v1470
        %v1664 = vunpack.c.l.b16 %v1471
        %v1665 = vunpack.c.l.b16 %v1472
        %v1666 = vunpack.c.l.b16 %v1473
        %v1667 = vunpack.c.l.b16 %v1474
        %v1668 = vunpack.c.l.b16 %v1475
        %v1669 = vunpack.c.l.b16 %v1476
        %v1670 = vunpack.c.l.b16 %v1477
        %v1671 = vpack.c.b16 %v1600, %v1599
        %v1672 = vpack.c.b16 %v1602, %v1601
        %v1673 = vpack.c.b16 %v1604, %v1603
        %v1674 = vpack.c.b16 %v1606, %v1605
        %v1675 = vpack.c.b16 %v1608, %v1607
        %v1676 = vpack.c.b16 %v1610, %v1609
        %v1677 = vpack.c.b16 %v1612, %v1611
        %v1678 = vpack.c.b16 %v1614, %v1613
        %v1679 = vpack.c.b16 %v1616, %v1615
        %v1680 = vpack.c.b16 %v1618, %v1617
        %v1681 = vpack.c.b16 %v1620, %v1619
        %v1682 = vpack.c.b16 %v1622, %v1621
        %v1683 = vpack.c.b16 %v1624, %v1623
        %v1684 = vpack.c.b16 %v1626, %v1625
        %v1685 = vpack.c.b16 %v1628, %v1627
        %v1686 = vpack.c.b16 %v1630, %v1629
        %v1687 = vpack.c.b16 %v1632, %v1631
        %v1688 = vpack.c.b16 %v1634, %v1633
        %v1689 = vpack.c.b16 %v1636, %v1635
        %v1690 = vpack.c.b16 %v1638, %v1637
        %v1691 = vpack.c.b16 %v1640, %v1639
        %v1692 = vpack.c.b16 %v1642, %v1641
        %v1693 = vpack.c.b16 %v1644, %v1643
        %v1694 = vpack.c.b16 %v1646, %v1645
        %v1695 = vpack.c.b16 %v1648, %v1647
        %v1696 = vpack.c.b16 %v1650, %v1649
        %v1697 = vpack.c.b16 %v1652, %v1651
        %v1698 = vpack.c.b16 %v1654, %v1653
        %v1699 = vpack.c.b16 %v1656, %v1655
        %v1700 = vpack.c.b16 %v1658, %v1657
        %v1701 = vpack.c.b16 %v1660, %v1659
        %v1702 = vpack.c.b16 %v1662, %v1661
        %v1703 = vpack.c.b16 %v1664, %v1663
        %v1704 = vpack.c.b16 %v1666, %v1665
        %v1705 = vpack.c.b16 %v1668, %v1667
        %v1706 = vpack.c.b16 %v1670, %v1669
        %v1744 = vsel %vm1193, %v1513, 0
        %v1747 = vsel %vm1193, %v1518, 0
        %1749 = vmatprep.subr.bf16.mxu0 0
        %1750 = vmatpush1.bf16.msra.mxu0 %v1678
        %1751 = vmatprep.subr.bf16.mxu0 0
        %1752 = vmatpush1.bf16.msra.mxu0 %v1677
        %1753 = vmatprep.subr.bf16.mxu0 0
        %1754 = vmatpush1.bf16.msra.mxu0 %v1676
        %1755 = vmatprep.subr.bf16.mxu0 0
        %1756 = vmatpush1.bf16.msra.mxu0 %v1675
        %1757 = vmatprep.subr.bf16.mxu0 0
        %1758 = vmatpush1.bf16.msra.mxu0 %v1674
        %1759 = vmatprep.subr.bf16.mxu0 0
        %1760 = vmatpush1.bf16.msra.mxu0 %v1673
        %1761 = vmatprep.subr.bf16.mxu0 0
        %1762 = vmatpush1.bf16.msra.mxu0 %v1672
        %1763 = vmatprep.subr.bf16.mxu0 0
        %1764 = vmatpush1.bf16.msra.mxu0 %v1671
        %1765 = vmatprep.subr.bf16.mxu0 0
        %1766 = vmatpush2.bf16.msra.mxu0 %v1686
        %1767 = vmatprep.subr.bf16.mxu0 0
        %1768 = vmatpush2.bf16.msra.mxu0 %v1685
        %1769 = vmatprep.subr.bf16.mxu0 0
        %1770 = vmatpush2.bf16.msra.mxu0 %v1684
        %1771 = vmatprep.subr.bf16.mxu0 0
        %1772 = vmatpush2.bf16.msra.mxu0 %v1683
        %1773 = vmatprep.subr.bf16.mxu0 0
        %1774 = vmatpush2.bf16.msra.mxu0 %v1682
        %1775 = vmatprep.subr.bf16.mxu0 0
        %1776 = vmatpush2.bf16.msra.mxu0 %v1681
        %1777 = vmatprep.subr.bf16.mxu0 0
        %1778 = vmatpush2.bf16.msra.mxu0 %v1680
        %1779 = vmatprep.subr.bf16.mxu0 0
        %1780 = vmatpush2.bf16.msra.mxu0 %v1679
        %1781 = vmatprep.mubr.bf16.mxu0 %v1510
        %1782 = vmatmul.mubr.bf16.gmra.mxu0 %v1509
        %v1783 = vpop.f32.mrf.mxu0
        %v1784 = vadd.f32 %v1483, %v1783
        %v1785 = vpop.f32.mrf.mxu0
        %v1786 = vpop.f32.mrf.mxu0
        %v1787 = vadd.f32 %v1483, %v1786
        %v1788 = vpop.f32.mrf.mxu0
        %1789 = vmatprep.mubr.bf16.mxu0 %v1515
        %1790 = vmatmul.mubr.bf16.gmra.mxu0 %v1514
        %v1791 = vpop.f32.mrf.mxu0
        %v1792 = vadd.f32 %v1483, %v1791
        %v1793 = vpop.f32.mrf.mxu0
        %v1794 = vpop.f32.mrf.mxu0
        %v1795 = vpop.f32.mrf.mxu0
        %1796 = vdwg.mxu0
        %1797 = vmatprep.subr.bf16.mxu0 0
        %1798 = vmatpush1.bf16.msra.mxu0 %v1694
        %1799 = vmatprep.subr.bf16.mxu0 0
        %1800 = vmatpush1.bf16.msra.mxu0 %v1693
        %1801 = vmatprep.subr.bf16.mxu0 0
        %1802 = vmatpush1.bf16.msra.mxu0 %v1692
        %1803 = vmatprep.subr.bf16.mxu0 0
        %1804 = vmatpush1.bf16.msra.mxu0 %v1691
        %1805 = vmatprep.subr.bf16.mxu0 0
        %1806 = vmatpush1.bf16.msra.mxu0 %v1690
        %1807 = vmatprep.subr.bf16.mxu0 0
        %1808 = vmatpush1.bf16.msra.mxu0 %v1689
        %1809 = vmatprep.subr.bf16.mxu0 0
        %1810 = vmatpush1.bf16.msra.mxu0 %v1688
        %1811 = vmatprep.subr.bf16.mxu0 0
        %1812 = vmatpush1.bf16.msra.mxu0 %v1687
        %1813 = vmatprep.subr.bf16.mxu0 0
        %1814 = vmatpush2.bf16.msra.mxu0 %v1702
        %1815 = vmatprep.subr.bf16.mxu0 0
        %1816 = vmatpush2.bf16.msra.mxu0 %v1701
        %1817 = vmatprep.subr.bf16.mxu0 0
        %1818 = vmatpush2.bf16.msra.mxu0 %v1700
        %1819 = vmatprep.subr.bf16.mxu0 0
        %1820 = vmatpush2.bf16.msra.mxu0 %v1699
        %1821 = vmatprep.subr.bf16.mxu0 0
        %1822 = vmatpush2.bf16.msra.mxu0 %v1698
        %1823 = vmatprep.subr.bf16.mxu0 0
        %1824 = vmatpush2.bf16.msra.mxu0 %v1697
        %1825 = vmatprep.subr.bf16.mxu0 0
        %1826 = vmatpush2.bf16.msra.mxu0 %v1696
        %1827 = vmatprep.subr.bf16.mxu0 0
        %1828 = vmatpush2.bf16.msra.mxu0 %v1695
        %1829 = vmatprep.mubr.bf16.mxu0 %v1512
        %1830 = vmatmul.mubr.bf16.gmra.mxu0 %v1511
        %v1831 = vpop.f32.mrf.mxu0
        %v1832 = vadd.f32 %v1784, %v1831
        %v1833 = vpop.f32.mrf.mxu0
        %v1834 = vpop.f32.mrf.mxu0
        %v1835 = vadd.f32 %v1787, %v1834
        %v1836 = vpop.f32.mrf.mxu0
        %1837 = vmatprep.mubr.bf16.mxu0 %v1517
        %1838 = vmatmul.mubr.bf16.gmra.mxu0 %v1516
        %v1839 = vpop.f32.mrf.mxu0
        %v1840 = vadd.f32 %v1792, %v1839
        %v1841 = vpop.f32.mrf.mxu0
        %v1842 = vpop.f32.mrf.mxu0
        %v1843 = vpop.f32.mrf.mxu0
        %1844 = vdwg.mxu0
        %1845 = vmatprep.subr.bf16.mxu0 0
        %1846 = vmatpush1.bf16.msra.mxu0 0
        %1847 = vmatprep.subr.bf16.mxu0 0
        %1848 = vmatpush1.bf16.msra.mxu0 0
        %1849 = vmatprep.subr.bf16.mxu0 0
        %1850 = vmatpush1.bf16.msra.mxu0 0
        %1851 = vmatprep.subr.bf16.mxu0 0
        %1852 = vmatpush1.bf16.msra.mxu0 0
        %1853 = vmatprep.subr.bf16.mxu0 0
        %1854 = vmatpush1.bf16.msra.mxu0 %v1706
        %1855 = vmatprep.subr.bf16.mxu0 0
        %1856 = vmatpush1.bf16.msra.mxu0 %v1705
        %1857 = vmatprep.subr.bf16.mxu0 0
        %1858 = vmatpush1.bf16.msra.mxu0 %v1704
        %1859 = vmatprep.subr.bf16.mxu0 0
        %1860 = vmatpush1.bf16.msra.mxu0 %v1703
        %1861 = vmatprep.subr.bf16.mxu0 0
        %1862 = vmatpush2.bf16.msra.mxu0 0
        %1863 = vmatprep.subr.bf16.mxu0 0
        %1864 = vmatpush2.bf16.msra.mxu0 0
        %1865 = vmatprep.subr.bf16.mxu0 0
        %1866 = vmatpush2.bf16.msra.mxu0 0
        %1867 = vmatprep.subr.bf16.mxu0 0
        %1868 = vmatpush2.bf16.msra.mxu0 0
        %1869 = vmatprep.subr.bf16.mxu0 0
        %1870 = vmatpush2.bf16.msra.mxu0 0
        %1871 = vmatprep.subr.bf16.mxu0 0
        %1872 = vmatpush2.bf16.msra.mxu0 0
        %1873 = vmatprep.subr.bf16.mxu0 0
        %1874 = vmatpush2.bf16.msra.mxu0 0
        %1875 = vmatprep.subr.bf16.mxu0 0
        %1876 = vmatpush2.bf16.msra.mxu0 0
        %1877 = vmatprep.mubr.bf16.mxu0 0
        %1878 = vmatmul.mubr.bf16.gmra.mxu0 %v1744
        %v1879 = vpop.f32.mrf.mxu0
        %v1880 = vadd.f32 %v1832, %v1879
        %v1881 = vpop.f32.mrf.mxu0
        %v1882 = vpop.f32.mrf.mxu0
        %v1883 = vadd.f32 %v1835, %v1882
        %v1884 = vpop.f32.mrf.mxu0
        %1885 = vmatprep.mubr.bf16.mxu0 0
        %1886 = vmatmul.mubr.bf16.gmra.mxu0 %v1747
        %v1887 = vpop.f32.mrf.mxu0
        %v1888 = vadd.f32 %v1840, %v1887
        %v1889 = vpop.f32.mrf.mxu0
        %v1890 = vpop.f32.mrf.mxu0
        %v1891 = vpop.f32.mrf.mxu0
        %1892 = vdwg.mxu0
        %v1893 = vsub.f32 0.0, %v1880
        %v1894 = vsub.f32 0.0, %v1883
        %v1895 = vsub.f32 0.0, %v1888
        %v1896 = vmul.f32 %v1893, 1.442695
        %v1897 = vpow.pop %v1896
        %v1898 = vmul.f32 %v1894, 1.442695
        %v1899 = vpow.pop %v1898
        %v1900 = vmul.f32 %v1895, 1.442695
        %v1901 = vpow.pop %v1900
        %v1902 = vadd.f32 %v1897, 1.0
        %v1903 = vadd.f32 %v1899, 1.0
        %v1904 = vadd.f32 %v1901, 1.0
        %v1905 = vrcp.pop %v1902
        %v1906 = vrcp.pop %v1903
        %v1907 = vrcp.pop %v1904
        %v1908 = vld [vmem:[%s8] sm:$0x1]
        %vm1909 = vcmp.gt.f32.partialorder %v1908, 0.5
        %v1910 = vsel %vm1909, 1, 0
        %v1911 = vlaneseq
        %v1912 = vshrl.u32 %v1911, 7
        %v1913 = vsub.s32 0, %v1912
        %v1914 = vrot.slane %v1910, %v1913
        %vm1915 = vcmp.eq.s32.totalorder %v1914, 1
        %v1916 = vsel %vm1915, %v1905, %v1880
        %v1917 = vsel %vm1915, %v1906, %v1883
        %v1918 = vsel %vm1915, %v1907, %v1888
        %1919 = vst [vmem:[%s325] sm:$0xff] %v1916
        %1920 = vst [vmem:[%s325 + $0x8] sm:$0xff] %v1917
        %1921 = vst [vmem:[%s325 + $0x10] sm:$0xff] %v1918
        %s1922 = sand.u32 %s225, 1
        %s1923 = scalar_lea.sflag [#allocation6], %s1922
        %s1924 = sand.u32 %s225, 1
        %s1925 = smul.addr %s1924, 24
        %s1926 = scalar_lea.vmem [#allocation5], %s1925
        // Predicated region
        $region57: #{tpu_custom_call.1} parent=55 // pred_check
          %p1927 = pneg %p235
        $region58: #{tpu_custom_call.1} parent=55 // pred_check_branch
          %1929 = sbr.rel (%p1927) target = $region60
        $region59: #{tpu_custom_call.1} parent=55 // pred_region
          %s1931 = ssub.s32 384, 384
          %1932 = vsyncadd %s1923, %s1931
          %s1933 = smul.addr %s23, 3
          %s1934 = smul.addr %s1933, 128
          %s1935 = scalar_lea.hbm %s9, %s1934
          %s1936 = sshll.u32 %s1926, 4
          %s1937 = int_to_ptr.vmem [resolvable:$true] %s1936
          %1942 = dma.vmem_to_hbm [thread:$0]  %s1937, 384, %s1935, %s1923, 128, 128, 8
        $region60: #{tpu_custom_call.1} parent=55 // pred_fallthru
          _
      $region56: #{tpu_custom_call.1} parent=5 // pred_fallthru
        _
      %p1943 = scmp.le.s32.totalorder 2, %s18
      // Predicated region
      $region61: #{tpu_custom_call.1} parent=5 // pred_check
        %p1944 = pneg %p1943
      $region62: #{tpu_custom_call.1} parent=5 // pred_check_branch
        %1946 = sbr.rel (%p1944) target = $region64
      $region63: #{tpu_custom_call.1} parent=5 // pred_region
        %s1947 = ssub.s32 %s18, 2
        // Predicated region
        $region65: #{tpu_custom_call.1} parent=63 // pred_check
          %p1948 = pneg %p241
        $region66: #{tpu_custom_call.1} parent=63 // pred_check_branch
          %1950 = sbr.rel (%p1948) target = $region68
        $region67: #{tpu_custom_call.1} parent=63 // pred_region
          %s1951 = sand.u32 %s226, 1
          %s1952 = scalar_lea.sflag [#allocation6], %s1951
          %s1953 = sand.u32 %s226, 1
          %s1954 = smul.addr %s1953, 24
          %s1955 = scalar_lea.vmem [#allocation5], %s1954
          %1956 = dma.done %s1952, 384
        $region68: #{tpu_custom_call.1} parent=63 // pred_fallthru
          _
      $region64: #{tpu_custom_call.1} parent=5 // pred_fallthru
        _
    $region6: #{tpu_custom_call.1} parent=1 // loop_footer
      %s22 = sadd.s32 1, %s18
    $region7: #{tpu_custom_call.1} parent=1 // loop_footer_branch
      %17 = sbr.rel target = $region3
    $region8: #{tpu_custom_call.1} parent=1 // loop_exit
      _
    %1957 = vsyncpa [#allocation6], 1
    %s1958 = scalar_lea.sflag [#allocation6], 1
    %1959 = vsyncpa %s1958, 1

</llo_original>
